<compile_context>
chip_gen: v7x
topology: tpu7x:2x2x1
jax: 0.10.0
libtpu: 0.0.40
codegen_flags: <defaults>
</compile_context>

<pallas_src>
import functools

import jax
import jax.numpy as jnp
from jax.experimental import pallas as pl
from jax.experimental.pallas import tpu as pltpu


def _round_up(x, m):
    return (x + m - 1) // m * m


def _cdiv(a, b):
    return (a + b - 1) // b


def _vmem_capacity_bytes():
    try:
        info = pltpu.get_tpu_info()
        return int(getattr(info, "vmem_capacity_bytes", 64 * 1024 * 1024))
    except Exception:
        return 64 * 1024 * 1024


_VMEM_CAP = _vmem_capacity_bytes()
if _VMEM_CAP >= 100 * 1024 * 1024:            # v5e / v6e: 128 MiB physical VMEM
    VMEM_LIMIT = 96 * 1024 * 1024
    TM_MAX, TN_MAX = 512, 512
else:                                          # v7x (64 MiB physical) or unknown
    VMEM_LIMIT = 40 * 1024 * 1024
    TM_MAX, TN_MAX = 256, 256
TK_FULL_MAX = 4096


# ----------------------------------------------------------------------------
# Pallas kernel 1: tiled matmul with fused per-channel sum / sum-of-squares
# (stats are per-M-block partials so the M grid axis is megacore-parallel)
# ----------------------------------------------------------------------------
def _mm_stats_kernel(a_ref, b_ref, o_ref, s_ref, ss_ref, acc_ref):
    k = pl.program_id(2)

    @pl.when(k == 0)
    def _():
        acc_ref[...] = jnp.zeros_like(acc_ref)

    acc_ref[...] += jnp.dot(a_ref[...], b_ref[...],
                            preferred_element_type=jnp.float32)

    @pl.when(k == pl.num_programs(2) - 1)
    def _():
        acc = acc_ref[...]
        o_ref[...] = acc.astype(o_ref.dtype)            # single write-back per tile
        s_ref[...] = jnp.sum(acc, axis=0, keepdims=True)[None]
        ss_ref[...] = jnp.sum(acc * acc, axis=0, keepdims=True)[None]


def pallas_matmul_stats(a, b, out_dtype=jnp.bfloat16):
    """out = a @ b plus per-column sum / sum-of-squares of out (padded rows are zero)."""
    M, K = a.shape
    K2, N = b.shape
    assert K == K2
    a = a.astype(jnp.bfloat16)
    b = b.astype(jnp.bfloat16)

    tm = min(TM_MAX, _round_up(M, 16))                  # adapt to tiny pixel counts
    Mp = _round_up(M, tm)
    if K <= TK_FULL_MAX:                                # full-K block: one reduction step
        tk, Kp = K, K
    else:
        tk = next((c for c in (1024, 512, 256, 128) if K % c == 0), 512)
        Kp = _round_up(K, tk)
    if N <= TN_MAX:                                     # full-N block: no channel padding
        tn, Np = N, N
    else:
        tn = TN_MAX
        Np = _round_up(N, tn)

    if (Mp, Kp) != (M, K):
        a = jnp.pad(a, ((0, Mp - M), (0, Kp - K)))
    if (Kp, Np) != (K, N):
        b = jnp.pad(b, ((0, Kp - K), (0, Np - N)))

    gm, gn, gk = Mp // tm, Np // tn, Kp // tk
    out, s, ss = pl.pallas_call(
        _mm_stats_kernel,
        out_shape=(jax.ShapeDtypeStruct((Mp, Np), out_dtype),
                   jax.ShapeDtypeStruct((gm, 1, Np), jnp.float32),
                   jax.ShapeDtypeStruct((gm, 1, Np), jnp.float32)),
        grid_spec=pltpu.PrefetchScalarGridSpec(
            num_scalar_prefetch=0,
            grid=(gm, gn, gk),
            in_specs=[pl.BlockSpec((tm, tk), lambda i, j, k: (i, k)),
                      pl.BlockSpec((tk, tn), lambda i, j, k: (k, j))],
            out_specs=[pl.BlockSpec((tm, tn), lambda i, j, k: (i, j)),
                       pl.BlockSpec((1, 1, tn), lambda i, j, k: (i, 0, j)),
                       pl.BlockSpec((1, 1, tn), lambda i, j, k: (i, 0, j))],
            scratch_shapes=[pltpu.VMEM((tm, tn), jnp.float32)]),
        compiler_params=pltpu.CompilerParams(
            dimension_semantics=("parallel", "parallel", "arbitrary"),
            vmem_limit_bytes=VMEM_LIMIT),
    )(a, b)
    if (Mp, Np) != (M, N):
        out = out[:M, :N]
    s = jnp.sum(s, axis=(0, 1))[:N]
    ss = jnp.sum(ss, axis=(0, 1))[:N]
    return out, s, ss


# ----------------------------------------------------------------------------
# Pallas kernel 2: direct 3x3 / stride-1 / pad-1 conv (no 9x im2col in HBM)
# ----------------------------------------------------------------------------
@functools.lru_cache(maxsize=None)
def _make_conv3x3_kernel(cin, shifts, tm, halo):
    def kernel(a0_ref, ah_ref, b_ref, v_ref, o_ref, s_ref, ss_ref, win_ref):
        # stage tm + halo rows of the flattened padded input in VMEM (f32 so the
        # statically-unaligned row shifts below read an unpacked sublane layout)
        # TODO(synk): bf16 staging with explicit odd-row unpack would halve the staging
        # stores further; kept f32 for layout simplicity.
        win_ref[0:tm, :] = a0_ref[...].astype(jnp.float32)
        win_ref[tm:tm + halo, :] = ah_ref[...].astype(jnp.float32)

        acc = jnp.zeros(o_ref.shape, jnp.float32)       # <= 128 KiB by tile construction
        for t, sft in enumerate(shifts):                 # 9 taps, statically unrolled
            at = win_ref[sft:sft + tm, :].astype(jnp.bfloat16)
            bt = b_ref[t * cin:(t + 1) * cin, :]
            acc = acc + jnp.dot(at, bt, preferred_element_type=jnp.float32)

        o_ref[...] = acc.astype(o_ref.dtype)
        masked = acc * v_ref[...]                        # drop padded-grid rows from stats
        s_ref[...] = jnp.sum(masked, axis=0, keepdims=True)[None]
        ss_ref[...] = jnp.sum(masked * acc, axis=0, keepdims=True)[None]
    return kernel


def _conv3x3_direct(x, w, out_dtype):
    """3x3/s1/p1 conv: every tap is a constant row shift of the flattened padded input."""
    N, H, W, Cin = x.shape
    Cout = w.shape[-1]
    rows = N * (H + 2) * (W + 2)
    max_shift = 2 * (W + 2) + 2
    tm = min(256, _round_up(rows, 16))                   # cap keeps the register acc small
    if tm < max_shift:
        return None

    # halo: smallest multiple of 8 >= max_shift that divides tm, so it can be addressed
    # as a regular block of the same flattened input array (no second full-block read).
    halo = _round_up(max_shift, 8)
    while tm % halo:
        halo += 8
    hs = tm // halo

    gi = _cdiv(rows, tm)
    out_rows = gi * tm

    xpad = jnp.pad(x, ((0, 0), (1, 1), (1, 1), (0, 0)))
    xflat = xpad.reshape(rows, Cin)
    xflat = jnp.pad(xflat, ((0, out_rows + halo - rows), (0, 0)))

    vmask = (jnp.arange(H + 2)[:, None] < H) & (jnp.arange(W + 2)[None, :] < W)
    valid = jnp.broadcast_to(vmask[None].astype(jnp.float32), (N, H + 2, W + 2))
    valid = jnp.pad(valid.reshape(rows, 1), ((0, out_rows - rows), (0, 0)))

    bflat = w.reshape(9 * Cin, Cout).astype(jnp.bfloat16)
    if Cout < 128:
        tn, Np = Cout, Cout
    else:
        Np = _round_up(Cout, 128)
        tn = 256 if (Np % 256 == 0 and tm * 256 * 4 <= 128 * 1024) else 128
        if Np != Cout:
            bflat = jnp.pad(bflat, ((0, 0), (0, Np - Cout)))

    shifts = tuple(di * (W + 2) + dj for di in range(3) for dj in range(3))
    kernel = _make_conv3x3_kernel(Cin, shifts, tm, halo)

    out, s, ss = pl.pallas_call(
        kernel,
        out_shape=(jax.ShapeDtypeStruct((out_rows, Np), out_dtype),
                   jax.ShapeDtypeStruct((gi, 1, Np), jnp.float32),
                   jax.ShapeDtypeStruct((gi, 1, Np), jnp.float32)),
        grid_spec=pltpu.PrefetchScalarGridSpec(
            num_scalar_prefetch=0,
            grid=(gi, Np // tn),
            in_specs=[pl.BlockSpec((tm, Cin), lambda i, j: (i, 0)),
                      pl.BlockSpec((halo, Cin), lambda i, j: ((i + 1) * hs, 0)),
                      pl.BlockSpec((9 * Cin, tn), lambda i, j: (0, j)),
                      pl.BlockSpec((tm, 1), lambda i, j: (i, 0))],
            out_specs=[pl.BlockSpec((tm, tn), lambda i, j: (i, j)),
                       pl.BlockSpec((1, 1, tn), lambda i, j: (i, 0, j)),
                       pl.BlockSpec((1, 1, tn), lambda i, j: (i, 0, j))],
            scratch_shapes=[pltpu.VMEM((tm + halo, Cin), jnp.float32)]),
        compiler_params=pltpu.CompilerParams(
            dimension_semantics=("parallel", "parallel"),
            vmem_limit_bytes=VMEM_LIMIT),
    )(xflat, xflat, bflat, valid)

    out = out[:rows].reshape(N, H + 2, W + 2, Np)[:, :H, :W, :Cout]
    s = jnp.sum(s, axis=(0, 1))[:Cout]
    ss = jnp.sum(ss, axis=(0, 1))[:Cout]
    return out, s, ss


# ----------------------------------------------------------------------------
# Pallas kernel 3: fused y = x*scale + shift (+ residual) (+ ReLU), bf16 I/O
# (rows are packed 128//C per vector row when C < 128 so stores are lane-dense)
# ----------------------------------------------------------------------------
@functools.lru_cache(maxsize=None)
def _make_affine_kernel(relu, has_res):
    if has_res:
        def kernel(x_ref, r_ref, s_ref, b_ref, o_ref):
            y = (x_ref[...].astype(jnp.float32) * s_ref[...] + b_ref[...]
                 + r_ref[...].astype(jnp.float32))
            if relu:
                y = jnp.maximum(y, 0.0)
            o_ref[...] = y.astype(o_ref.dtype)
    else:
        def kernel(x_ref, s_ref, b_ref, o_ref):
            y = x_ref[...].astype(jnp.float32) * s_ref[...] + b_ref[...]
            if relu:
                y = jnp.maximum(y, 0.0)
            o_ref[...] = y.astype(o_ref.dtype)
    return kernel


def pallas_affine(x2, scale, shift, relu=False, residual=None,
                  out_dtype=jnp.bfloat16):
    R, C = x2.shape
    scale = scale.astype(jnp.float32)
    shift = shift.astype(jnp.float32)

    # lane-dense packing: fold 128//C logical rows into one vector row when C < 128
    pack = 128 // C if (C < 128 and 128 % C == 0) else 1
    Rr = R
    if pack > 1:
        Rr = _round_up(R, pack)
        if Rr != R:
            x2 = jnp.pad(x2, ((0, Rr - R), (0, 0)))
            if residual is not None:
                residual = jnp.pad(residual, ((0, Rr - R), (0, 0)))
        x2 = x2.reshape(Rr // pack, pack * C)
        if residual is not None:
            residual = residual.reshape(Rr // pack, pack * C)
        scale = jnp.tile(scale, pack)
        shift = jnp.tile(shift, pack)

    Rk, Ck = x2.shape
    tr = min(512, _round_up(Rk, 8))
    Rp = _round_up(Rk, tr)
    tc = min(512, Ck) if Ck % 128 == 0 else Ck           # full-extent block otherwise
    if Rp != Rk:
        x2 = jnp.pad(x2, ((0, Rp - Rk), (0, 0)))
        if residual is not None:
            residual = jnp.pad(residual, ((0, Rp - Rk), (0, 0)))

    args = [x2]
    in_specs = [pl.BlockSpec((tr, tc), lambda i, j: (i, j))]
    if residual is not None:
        args.append(residual)
        in_specs.append(pl.BlockSpec((tr, tc), lambda i, j: (i, j)))
    args += [scale.reshape(1, Ck), shift.reshape(1, Ck)]
    in_specs += [pl.BlockSpec((1, tc), lambda i, j: (0, j)),
                 pl.BlockSpec((1, tc), lambda i, j: (0, j))]

    out = pl.pallas_call(
        _make_affine_kernel(relu, residual is not None),
        out_shape=jax.ShapeDtypeStruct((Rp, Ck), out_dtype),
        grid_spec=pltpu.PrefetchScalarGridSpec(
            num_scalar_prefetch=0,
            grid=(Rp // tr, Ck // tc),
            in_specs=in_specs,
            out_specs=pl.BlockSpec((tr, tc), lambda i, j: (i, j))),
        compiler_params=pltpu.CompilerParams(
            dimension_semantics=("parallel", "parallel"),
            vmem_limit_bytes=VMEM_LIMIT),
    )(*args)

    if Rp != Rk:
        out = out[:Rk]
    if pack > 1:
        out = out.reshape(Rr, C)
    if out.shape[0] != R:
        out = out[:R]
    return out


# ----------------------------------------------------------------------------
# Pallas kernel 4: fused bias + softmax + cross-entropy head on (6, pixels)
# ----------------------------------------------------------------------------
def _head_kernel(x_ref, b_ref, t_ref, v_ref, p_ref, l_ref):
    x = x_ref[...] + b_ref[...]                      # fold the 1x1-conv bias in here
    m = jnp.max(x, axis=0, keepdims=True)
    e = jnp.exp(x - m)
    den = jnp.sum(e, axis=0, keepdims=True)
    p_ref[...] = e / den

    lse = m + jnp.log(den)
    cls = jax.lax.broadcasted_iota(jnp.int32, x.shape, 0)
    picked = jnp.sum(jnp.where(cls == t_ref[...], x, 0.0), axis=0, keepdims=True)
    l_ref[...] = (lse - picked) * v_ref[...]          # per-pixel loss row, summed outside


def pallas_softmax_ce(logits_t, bias, targets_row, n_valid):
    C, R = logits_t.shape
    if R % 512 == 0:
        tc = 512
    elif R % 256 == 0:
        tc = 256
    else:
        tc = 128
    Rp = _round_up(R, tc)
    if Rp != R:
        logits_t = jnp.pad(logits_t, ((0, 0), (0, Rp - R)))
        targets_row = jnp.pad(targets_row, ((0, 0), (0, Rp - R)), constant_values=-1)
    valid = (jnp.arange(Rp)[None, :] < R).astype(jnp.float32)

    prob_t, pix_loss = pl.pallas_call(
        _head_kernel,
        out_shape=(jax.ShapeDtypeStruct((C, Rp), jnp.float32),
                   jax.ShapeDtypeStruct((1, Rp), jnp.float32)),
        grid_spec=pltpu.PrefetchScalarGridSpec(
            num_scalar_prefetch=0,
            grid=(Rp // tc,),
            in_specs=[pl.BlockSpec((C, tc), lambda i: (0, i)),
                      pl.BlockSpec((C, 1), lambda i: (0, 0)),
                      pl.BlockSpec((1, tc), lambda i: (0, i)),
                      pl.BlockSpec((1, tc), lambda i: (0, i))],
            out_specs=[pl.BlockSpec((C, tc), lambda i: (0, i)),
                       pl.BlockSpec((1, tc), lambda i: (0, i))]),
        compiler_params=pltpu.CompilerParams(
            dimension_semantics=("parallel",),
            vmem_limit_bytes=VMEM_LIMIT),
    )(logits_t, bias.astype(jnp.float32), targets_row, valid)
    return prob_t[:, :R], jnp.sum(pix_loss) / n_valid


# ----------------------------------------------------------------------------
# NN building blocks (glue in XLA, compute in Pallas)
# ----------------------------------------------------------------------------
def conv2d(x, w, stride=1, padding=0, out_dtype=jnp.bfloat16):
    """NHWC conv; returns (out, per-channel sum, per-channel sum-of-squares)."""
    N, H, W, Cin = x.shape
    kh, kw, _, Cout = w.shape
    x = x.astype(jnp.bfloat16)

    if (kh == 3 and kw == 3 and stride == 1 and padding == 1
            and Cin % 8 == 0 and Cin <= 4096):
        try:
            res = _conv3x3_direct(x, w, out_dtype)
            if res is not None:
                return res
        except Exception:
            # TODO(synk): direct 3x3 path failed to lower on this chip; im2col fallback.
            pass

    if padding:
        x = jnp.pad(x, ((0, 0), (padding, padding), (padding, padding), (0, 0)))
    Hp, Wp = x.shape[1], x.shape[2]
    Ho = (Hp - kh) // stride + 1
    Wo = (Wp - kw) // stride + 1
    if kh == 1 and kw == 1 and stride == 1:
        patches = x
    else:
        # TODO(synk): stride-2 3x3 convs still materialize 9x im2col patches in HBM;
        # a strided direct kernel would remove that round trip.
        cols = []
        for i in range(kh):
            for j in range(kw):
                cols.append(x[:, i:i + (Ho - 1) * stride + 1:stride,
                              j:j + (Wo - 1) * stride + 1:stride, :])
        patches = jnp.concatenate(cols, axis=-1)
    a = patches.reshape(N * Ho * Wo, kh * kw * Cin)
    b = w.reshape(kh * kw * Cin, Cout)
    out, s, ss = pallas_matmul_stats(a, b, out_dtype=out_dtype)
    return out.reshape(N, Ho, Wo, Cout), s, ss


def batchnorm_apply(x, s, ss, gamma, beta, relu=True, residual=None, eps=1e-5):
    """Training-mode BatchNorm2d (batch stats from the conv epilogue) + residual + ReLU."""
    N, H, W, C = x.shape
    cnt = float(N * H * W)
    mean = s / cnt
    # TODO(synk): E[x^2]-E[x]^2 is cancellation-prone for huge activations; clamp at 0.
    var = jnp.maximum(ss / cnt - mean * mean, 0.0)
    scale = gamma / jnp.sqrt(var + eps)
    shift = beta - mean * scale
    r2 = residual.reshape(-1, C) if residual is not None else None
    y2 = pallas_affine(x.reshape(-1, C), scale, shift, relu=relu, residual=r2)
    return y2.reshape(N, H, W, C)


def conv_bn(x, w, bn, stride=1, padding=0, relu=True, residual=None):
    y, s, ss = conv2d(x, w, stride=stride, padding=padding)
    return batchnorm_apply(y, s, ss, bn['gamma'], bn['beta'],
                           relu=relu, residual=residual)


def avg_pool2(x):
    N, H, W, C = x.shape
    return x.reshape(N, H // 2, 2, W // 2, 2, C).mean(axis=(2, 4))


def upsample2_nearest(x):
    # TODO(synk): decoder upsample + skip-concat remain XLA glue passes; folding them into
    # the following conv's input staging would remove ~2 HBM passes per decoder stage.
    return jnp.repeat(jnp.repeat(x, 2, axis=1), 2, axis=2)


# ----------------------------------------------------------------------------
# deterministic parameter init (resnet50d encoder + UNet decoder + logit head)
# ----------------------------------------------------------------------------
_KEY = [jax.random.PRNGKey(42)]


def _next_key():
    _KEY[0], k = jax.random.split(_KEY[0])
    return k


def init_conv(cin, cout, k):
    fan_in = cin * k * k
    return jax.random.normal(_next_key(), (k, k, cin, cout),
                             jnp.float32) * (2.0 / fan_in) ** 0.5


def init_bn(c):
    return {'gamma': jnp.ones((c,), jnp.float32),
            'beta': jnp.zeros((c,), jnp.float32)}


def init_params():
    p = {}
    p['stem'] = {
        'conv1': init_conv(3, 32, 3), 'bn1': init_bn(32),
        'conv2': init_conv(32, 32, 3), 'bn2': init_bn(32),
        'conv3': init_conv(32, 64, 3), 'bn3': init_bn(64),
    }
    layer_cfg = [(64, 3, 1), (128, 4, 2), (256, 6, 2), (512, 3, 2)]
    inplanes = 64
    layers = []
    for planes, nblocks, stride in layer_cfg:
        blocks = []
        for bi in range(nblocks):
            s = stride if bi == 0 else 1
            bp = {
                'conv1': init_conv(inplanes, planes, 1), 'bn1': init_bn(planes),
                'conv2': init_conv(planes, planes, 3), 'bn2': init_bn(planes),
                'conv3': init_conv(planes, planes * 4, 1),
                'bn3': init_bn(planes * 4),
                'stride': s,
            }
            if bi == 0:          # channel change (and possibly stride) -> avg-pool downsample
                bp['ds_conv'] = init_conv(inplanes, planes * 4, 1)
                bp['ds_bn'] = init_bn(planes * 4)
            blocks.append(bp)
            inplanes = planes * 4
        layers.append(blocks)
    p['layers'] = layers

    enc_dim = [64, 256, 512, 1024, 2048]
    dec_dim = [256, 128, 64, 32, 16]
    skip_dim = enc_dim[:-1][::-1] + [0]
    in_dim = [enc_dim[-1]] + dec_dim[:-1]
    dec = []
    for i, s, o in zip(in_dim, skip_dim, dec_dim):
        dec.append({
            'conv1': init_conv(i + s, o, 3), 'bn1': init_bn(o),
            'conv2': init_conv(o, o, 3), 'bn2': init_bn(o),
        })
    p['decoder'] = dec
    p['logit_w'] = init_conv(16, 6, 1)
    p['logit_b'] = jnp.zeros((6,), jnp.float32)
    return p


# ----------------------------------------------------------------------------
# forward pass
# ----------------------------------------------------------------------------
def bottleneck_fwd(x, bp):
    stride = bp['stride']
    sc = x
    if 'ds_conv' in bp:
        if stride > 1:
            sc = avg_pool2(sc)
        sc = conv_bn(sc, bp['ds_conv'], bp['ds_bn'], relu=False)
    y = conv_bn(x, bp['conv1'], bp['bn1'], relu=True)
    y = conv_bn(y, bp['conv2'], bp['bn2'], stride=stride, padding=1, relu=True)
    y = conv_bn(y, bp['conv3'], bp['bn3'], relu=True, residual=sc)
    return y


def net_forward(params, image, mask):
    B, _, H, W = image.shape
    x = image.astype(jnp.float32) / 255.0
    x = (x - 0.0) / 1.0                               # mean=0, std=1 buffers
    x = jnp.broadcast_to(x, (B, 3, H, W))             # expand to 3 channels
    x = jnp.transpose(x, (0, 2, 3, 1)).astype(jnp.bfloat16)   # -> NHWC bf16

    st = params['stem']
    x = conv_bn(x, st['conv1'], st['bn1'], stride=2, padding=1, relu=True)
    x = conv_bn(x, st['conv2'], st['bn2'], stride=1, padding=1, relu=True)
    x = conv_bn(x, st['conv3'], st['bn3'], stride=1, padding=1, relu=True)
    encode = [x]

    x = avg_pool2(x)                                  # F.avg_pool2d(k=2, s=2)
    for blocks in params['layers']:
        for bp in blocks:
            x = bottleneck_fwd(x, bp)
        encode.append(x)

    # UNet decoder
    skips = encode[:-1][::-1] + [None]
    d = encode[-1]
    for dp, s in zip(params['decoder'], skips):
        d = upsample2_nearest(d)
        if s is not None:
            d = jnp.concatenate([d, s], axis=-1)
        d = conv_bn(d, dp['conv1'], dp['bn1'], stride=1, padding=1, relu=True)
        d = conv_bn(d, dp['conv2'], dp['bn2'], stride=1, padding=1, relu=True)

    logit, _, _ = conv2d(d, params['logit_w'], out_dtype=jnp.float32)

    # TODO(synk): the (pixels,6)->(6,pixels) transpose for the head is still an XLA pass;
    # a lane-dense direct (6,pixels) logit matmul would remove it.
    logits_t = logit.reshape(-1, 6).T                 # (6, B*H*W): lane-dense head
    targets = mask.reshape(1, -1).astype(jnp.int32)
    prob_t, loss = pallas_softmax_ce(logits_t, params['logit_b'].reshape(6, 1),
                                     targets, n_valid=B * H * W)
    prob = prob_t.reshape(6, B, H, W).transpose(1, 0, 2, 3)   # -> NCHW
    return {'mask_loss': loss, 'probability': prob}


# ----------------------------------------------------------------------------
if __name__ == "__main__":
    key = jax.random.PRNGKey(0)
    k1, k2 = jax.random.split(key)
    B, H, W = 2, 32, 32
    image = jax.random.randint(k1, (B, 1, H, W), 0, 256,
                               dtype=jnp.int32).astype(jnp.uint8)
    mask = jax.random.randint(k2, (B, H, W), 0, 6, dtype=jnp.int32)

    params = init_params()
    out = net_forward(params, image, mask)
    out = jax.block_until_ready(out)
    assert out['probability'].shape == (B, 6, H, W)
    assert out['mask_loss'].shape == ()
    print("KERNEL_OK")
</pallas_src>

<mosaic_0001>
module attributes {stable_mosaic.version = 11 : i64} {
  func.func @_mm_stats_kernel(%arg0: i32, %arg1: i32, %arg2: i32, %arg3: memref<256x27xbf16, #tpu.memory_space<vmem>>, %arg4: memref<27x32xbf16, #tpu.memory_space<vmem>>, %arg5: memref<256x32xbf16, #tpu.memory_space<vmem>>, %arg6: memref<1x1x32xf32, #tpu.memory_space<vmem>>, %arg7: memref<1x1x32xf32, #tpu.memory_space<vmem>>, %arg8: memref<256x32xf32, #tpu.memory_space<vmem>>) attributes {dimension_semantics = [#tpu.dimension_semantics<parallel>, #tpu.dimension_semantics<parallel>, #tpu.dimension_semantics<arbitrary>], iteration_bounds = array<i64: 2, 1, 1>, scalar_prefetch = 0 : i64, scratch_operands = 1 : i64, tpu.core_type = #tpu.core_type<tc>, window_params = [{transform_indices = @transform_0, window_bounds = array<i64: 256, 27>}, {transform_indices = @transform_1, window_bounds = array<i64: 27, 32>}, {transform_indices = @transform_2, window_bounds = array<i64: 256, 32>}, {transform_indices = @transform_3, window_bounds = array<i64: 1, 1, 32>}, {transform_indices = @transform_4, window_bounds = array<i64: 1, 1, 32>}]} {
    %c0_i32 = arith.constant 0 : i32
    %0 = arith.cmpi eq, %arg2, %c0_i32 : i32
    %1 = arith.extui %0 : i1 to i32
    %c0_i32_0 = arith.constant 0 : i32
    %2 = arith.cmpi ne, %1, %c0_i32_0 : i32
    scf.if %2 {
      %cst_10 = arith.constant 0.000000e+00 : f32
      %12 = vector.broadcast %cst_10 : f32 to vector<256x32xf32>
      %c0_11 = arith.constant 0 : index
      %c0_12 = arith.constant 0 : index
      %13 = vector.load %arg8[%c0_11, %c0_12] : memref<256x32xf32, #tpu.memory_space<vmem>>, vector<256x32xf32>
      tpu.vector_store %arg8[%c0_11, %c0_12], %12 {strides = array<i32>} : memref<256x32xf32, #tpu.memory_space<vmem>>, vector<256x32xf32>,
    } else {
    }
    %c0 = arith.constant 0 : index
    %c0_1 = arith.constant 0 : index
    %3 = vector.load %arg8[%c0, %c0_1] : memref<256x32xf32, #tpu.memory_space<vmem>>, vector<256x32xf32>
    %c0_2 = arith.constant 0 : index
    %c0_3 = arith.constant 0 : index
    %4 = vector.load %arg3[%c0_2, %c0_3] : memref<256x27xbf16, #tpu.memory_space<vmem>>, vector<256x27xbf16>
    %c0_4 = arith.constant 0 : index
    %c0_5 = arith.constant 0 : index
    %5 = vector.load %arg4[%c0_4, %c0_5] : memref<27x32xbf16, #tpu.memory_space<vmem>>, vector<27x32xbf16>
    %cst = arith.constant dense<0.000000e+00> : vector<256x32xf32>
    %6 = tpu.matmul %4, %5, %cst {dimension_numbers = #tpu.dot_dimension_numbers<[1], [0], [0], [1], [0, 0, 1, 1], [], []>} : vector<256x27xbf16>, vector<27x32xbf16>, vector<256x32xf32> -> vector<256x32xf32>
    %7 = arith.addf %3, %6 : vector<256x32xf32>
    %c0_6 = arith.constant 0 : index
    %c0_7 = arith.constant 0 : index
    %8 = vector.load %arg8[%c0_6, %c0_7] : memref<256x32xf32, #tpu.memory_space<vmem>>, vector<256x32xf32>
    tpu.vector_store %arg8[%c0_6, %c0_7], %7 {strides = array<i32>} : memref<256x32xf32, #tpu.memory_space<vmem>>, vector<256x32xf32>,
    %c0_i32_8 = arith.constant 0 : i32
    %9 = arith.cmpi eq, %arg2, %c0_i32_8 : i32
    %10 = arith.extui %9 : i1 to i32
    %c0_i32_9 = arith.constant 0 : i32
    %11 = arith.cmpi ne, %10, %c0_i32_9 : i32
    scf.if %11 {
      %c0_10 = arith.constant 0 : index
      %c0_11 = arith.constant 0 : index
      %12 = vector.load %arg8[%c0_10, %c0_11] : memref<256x32xf32, #tpu.memory_space<vmem>>, vector<256x32xf32>
      %13 = arith.truncf %12 : vector<256x32xf32> to vector<256x32xbf16>
      %c0_12 = arith.constant 0 : index
      %c0_13 = arith.constant 0 : index
      %14 = vector.load %arg5[%c0_12, %c0_13] : memref<256x32xbf16, #tpu.memory_space<vmem>>, vector<256x32xbf16>
      tpu.vector_store %arg5[%c0_12, %c0_13], %13 {strides = array<i32>} : memref<256x32xbf16, #tpu.memory_space<vmem>>, vector<256x32xbf16>,
      %cst_14 = arith.constant dense<0.000000e+00> : vector<32xf32>
      %15 = vector.multi_reduction <add>, %12, %cst_14 [0] : vector<256x32xf32> to vector<32xf32>
      %16 = vector.shape_cast %15 : vector<32xf32> to vector<1x32xf32>
      %17 = vector.shape_cast %16 : vector<1x32xf32> to vector<1x1x32xf32>
      %c0_15 = arith.constant 0 : index
      %c0_16 = arith.constant 0 : index
      %c0_17 = arith.constant 0 : index
      %18 = vector.load %arg6[%c0_15, %c0_16, %c0_17] : memref<1x1x32xf32, #tpu.memory_space<vmem>>, vector<1x1x32xf32>
      tpu.vector_store %arg6[%c0_15, %c0_16, %c0_17], %17 {strides = array<i32>} : memref<1x1x32xf32, #tpu.memory_space<vmem>>, vector<1x1x32xf32>,
      %19 = arith.mulf %12, %12 : vector<256x32xf32>
      %cst_18 = arith.constant dense<0.000000e+00> : vector<32xf32>
      %20 = vector.multi_reduction <add>, %19, %cst_18 [0] : vector<256x32xf32> to vector<32xf32>
      %21 = vector.shape_cast %20 : vector<32xf32> to vector<1x32xf32>
      %22 = vector.shape_cast %21 : vector<1x32xf32> to vector<1x1x32xf32>
      %c0_19 = arith.constant 0 : index
      %c0_20 = arith.constant 0 : index
      %c0_21 = arith.constant 0 : index
      %23 = vector.load %arg7[%c0_19, %c0_20, %c0_21] : memref<1x1x32xf32, #tpu.memory_space<vmem>>, vector<1x1x32xf32>
      tpu.vector_store %arg7[%c0_19, %c0_20, %c0_21], %22 {strides = array<i32>} : memref<1x1x32xf32, #tpu.memory_space<vmem>>, vector<1x1x32xf32>,
    } else {
    }
    return
  }
  func.func @transform_0(%arg0: i32, %arg1: i32, %arg2: i32) -> (i32, i32) {
    %c0_i32 = arith.constant 0 : i32
    return %arg0, %arg2 : i32, i32
  }
  func.func @transform_1(%arg0: i32, %arg1: i32, %arg2: i32) -> (i32, i32) {
    %c0_i32 = arith.constant 0 : i32
    return %arg2, %arg1 : i32, i32
  }
  func.func @transform_2(%arg0: i32, %arg1: i32, %arg2: i32) -> (i32, i32) {
    %c0_i32 = arith.constant 0 : i32
    return %arg0, %arg1 : i32, i32
  }
  func.func @transform_3(%arg0: i32, %arg1: i32, %arg2: i32) -> (i32, i32, i32) {
    %c0_i32 = arith.constant 0 : i32
    %c0_i32_0 = arith.constant 0 : i32
    return %arg0, %c0_i32, %arg1 : i32, i32, i32
  }
  func.func @transform_4(%arg0: i32, %arg1: i32, %arg2: i32) -> (i32, i32, i32) {
    %c0_i32 = arith.constant 0 : i32
    %c0_i32_0 = arith.constant 0 : i32
    return %arg0, %c0_i32, %arg1 : i32, i32, i32
  }
}

</mosaic_0001>

<llo_original>
// kernel: tpu_custom_call.1
$region0: #{tpu_custom_call.1}
  #allocation0 [shape = 'u32[]', space=smem, size = 0x4, offset = 0x4, fixed_abs, tag = 'smem constant byte address 0x4 - core index']
  #allocation1 [shape = 'u32[144,128]{1,0:T(1,128)}', space=vmem, size = 0x12000, scoped, tag = 'internal scratch']
  #allocation2 [shape = 'f32[256,32]{1,0:T(8,128)}', space=vmem, size = 0x20000, scoped, tag = 'scratch operand']
  %s0 = inlined_call_operand.vmem [shape: bf16[512,27], index: 0, kind: input, shape index: {}]
  %s1 = inlined_call_operand.vmem [shape: bf16[27,32], index: 1, kind: input, shape index: {}]
  %s2 = inlined_call_operand.vmem [shape: bf16[512,32], index: 2, kind: output, shape index: {0}]
  %s3 = inlined_call_operand.hbm [shape: f32[2,1,32], index: 3, kind: output, shape index: {1}]
  %s4 = inlined_call_operand.hbm [shape: f32[2,1,32], index: 4, kind: output, shape index: {2}]
  %5 = xla_tuple %s2, %s3, %s4
  %s6 = sld [smem:[#allocation0]]
  $region65: #{tpu_custom_call.1} parent=0
    _
  %s8 = ssub.s32 1, %s6
  %s9 = scalar_select 0, %s8, %s6
  $region1: #{tpu_custom_call.1} parent=0
    #allocation3 [shape = 'u8[1024]{0}', space=vmem, size = 0x400, scoped, tag = 'output window, operand 1']
    #allocation4 [shape = 's32[2]{0}', space=sflag, size = 0x8, scoped, tag = 'scoped memory for tpu_custom_call.1']
    #allocation5 [shape = 'u8[1024]{0}', space=vmem, size = 0x400, scoped, tag = 'output window, operand 2']
    #allocation6 [shape = 's32[2]{0}', space=sflag, size = 0x8, scoped, tag = 'scoped memory for tpu_custom_call.1']
    %10 = vsyncpa [#allocation4], 0
    %s11 = scalar_lea.sflag [#allocation4], 1
    %12 = vsyncpa %s11, 0
    %13 = vsyncpa [#allocation6], 0
    %s14 = scalar_lea.sflag [#allocation6], 1
    %15 = vsyncpa %s14, 0
    loop: start=0, step=1, limit=4
    $region2: #{tpu_custom_call.1} parent=1 // loop_pre_header
      _
    $region3: #{tpu_custom_call.1} parent=1 // loop_header
      %s17 = sphi 0, %s21
      %p18 = scmp.ge.s32.totalorder %s17, 4
      %s24 = sphi 0, %s43
      %s25 = sphi 0, %s39
      %s26 = sphi 0, %s35
      %s27 = sphi 0, %s24
      %s28 = sphi 0, %s25
      %s29 = sphi 0, %s26
      %s30 = sphi 0, %s27
      %s31 = sphi 0, %s28
      %s32 = sphi 0, %s29
      %s48 = sphi 0, %s50
      %s51 = sphi 0, %s48
      %s52 = sphi 0, %s51
      %s68 = sphi 0, %s52
      %s76 = sphi 0, %s78
      %s79 = sphi 0, %s76
      %s80 = sphi 0, %s79
      %s96 = sphi 0, %s80
      %s104 = sphi 0, %s106
      %s107 = sphi 0, %s104
      %s108 = sphi 0, %s107
      %s124 = sphi 0, %s108
      %s132 = sphi 0, %s134
      %s135 = sphi 0, %s132
      %s136 = sphi 0, %s135
      %s152 = sphi 0, %s136
      %s160 = sphi 0, %s162
      %s163 = sphi 0, %s160
      %s164 = sphi 0, %s163
      %s180 = sphi 0, %s164
    $region4: #{tpu_custom_call.1} parent=1 // loop_header_branch
      %20 = sbr.rel (%p18) target = $region8
    $region5: #{tpu_custom_call.1} parent=1 // loop_body
      %s22 = ssub.s32 %s17, 1
      %s23 = ssub.s32 %s17, 2
      %s33 = sadd.s32 1, %s26
      %p34 = scmp.ge.s32.totalorder %s33, 1
      %s35 = scalar_select %p34, 0, %s33
      %s36 = sadd.s32 1, %s25
      %s37 = scalar_select %p34, %s36, %s25
      %p38 = scmp.ge.s32.totalorder %s37, 1
      %s39 = scalar_select %p38, 0, %s37
      %s40 = sadd.s32 1, %s24
      %s41 = scalar_select %p38, %s40, %s24
      %p42 = scmp.ge.s32.totalorder %s41, 2
      %s43 = scalar_select %p42, 0, %s41
      %s44 = ssub.s32 %s24, %s43
      %s45 = ssub.s32 %s26, %s35
      %s46 = sor.u32 %s44, %s45
      %p47 = scmp.eq.s32.totalorder %s46, 0
      %s49 = sadd.s32 %s48, 1
      %s50 = scalar_select %p47, %s48, %s49
      %p53 = pneg %p47
      %p54 = scmp.eq.s32.totalorder %s17, 1
      %p55 = por %p53, %p54
      %p56 = scmp.ne.s32.totalorder %s48, %s51
      %p57 = scmp.eq.s32.totalorder %s17, 0
      %p58 = por %p56, %p57
      %p59 = scmp.ne.s32.totalorder %s48, %s51
      %p60 = scmp.eq.s32.totalorder %s22, 1
      %p61 = por %p59, %p60
      %p62 = scmp.ne.s32.totalorder %s51, %s52
      %p63 = scmp.eq.s32.totalorder %s22, 0
      %p64 = por %p62, %p63
      %p65 = scmp.ne.s32.totalorder %s51, %s52
      %p66 = scmp.eq.s32.totalorder %s23, 1
      %p67 = por %p65, %p66
      %p69 = scmp.ne.s32.totalorder %s52, %s68
      %p70 = scmp.eq.s32.totalorder %s23, 0
      %p71 = por %p69, %p70
      %s72 = ssub.s32 %s26, %s35
      %s73 = ssub.s32 %s25, %s39
      %s74 = sor.u32 %s72, %s73
      %p75 = scmp.eq.s32.totalorder %s74, 0
      %s77 = sadd.s32 %s76, 1
      %s78 = scalar_select %p75, %s76, %s77
      %p81 = pneg %p75
      %p82 = scmp.eq.s32.totalorder %s17, 1
      %p83 = por %p81, %p82
      %p84 = scmp.ne.s32.totalorder %s76, %s79
      %p85 = scmp.eq.s32.totalorder %s17, 0
      %p86 = por %p84, %p85
      %p87 = scmp.ne.s32.totalorder %s76, %s79
      %p88 = scmp.eq.s32.totalorder %s22, 1
      %p89 = por %p87, %p88
      %p90 = scmp.ne.s32.totalorder %s79, %s80
      %p91 = scmp.eq.s32.totalorder %s22, 0
      %p92 = por %p90, %p91
      %p93 = scmp.ne.s32.totalorder %s79, %s80
      %p94 = scmp.eq.s32.totalorder %s23, 1
      %p95 = por %p93, %p94
      %p97 = scmp.ne.s32.totalorder %s80, %s96
      %p98 = scmp.eq.s32.totalorder %s23, 0
      %p99 = por %p97, %p98
      %s100 = ssub.s32 %s24, %s43
      %s101 = ssub.s32 %s25, %s39
      %s102 = sor.u32 %s100, %s101
      %p103 = scmp.eq.s32.totalorder %s102, 0
      %s105 = sadd.s32 %s104, 1
      %s106 = scalar_select %p103, %s104, %s105
      %p109 = pneg %p103
      %p110 = scmp.eq.s32.totalorder %s17, 1
      %p111 = por %p109, %p110
      %p112 = scmp.ne.s32.totalorder %s104, %s107
      %p113 = scmp.eq.s32.totalorder %s17, 0
      %p114 = por %p112, %p113
      %p115 = scmp.ne.s32.totalorder %s104, %s107
      %p116 = scmp.eq.s32.totalorder %s22, 1
      %p117 = por %p115, %p116
      %p118 = scmp.ne.s32.totalorder %s107, %s108
      %p119 = scmp.eq.s32.totalorder %s22, 0
      %p120 = por %p118, %p119
      %p121 = scmp.ne.s32.totalorder %s107, %s108
      %p122 = scmp.eq.s32.totalorder %s23, 1
      %p123 = por %p121, %p122
      %p125 = scmp.ne.s32.totalorder %s108, %s124
      %p126 = scmp.eq.s32.totalorder %s23, 0
      %p127 = por %p125, %p126
      %s128 = ssub.s32 %s24, %s43
      %s129 = ssub.s32 %s25, %s39
      %s130 = sor.u32 %s128, %s129
      %p131 = scmp.eq.s32.totalorder %s130, 0
      %s133 = sadd.s32 %s132, 1
      %s134 = scalar_select %p131, %s132, %s133
      %p137 = pneg %p131
      %p138 = scmp.eq.s32.totalorder %s17, 1
      %p139 = por %p137, %p138
      %p140 = scmp.ne.s32.totalorder %s132, %s135
      %p141 = scmp.eq.s32.totalorder %s17, 0
      %p142 = por %p140, %p141
      %p143 = scmp.ne.s32.totalorder %s132, %s135
      %p144 = scmp.eq.s32.totalorder %s22, 1
      %p145 = por %p143, %p144
      %p146 = scmp.ne.s32.totalorder %s135, %s136
      %p147 = scmp.eq.s32.totalorder %s22, 0
      %p148 = por %p146, %p147
      %p149 = scmp.ne.s32.totalorder %s135, %s136
      %p150 = scmp.eq.s32.totalorder %s23, 1
      %p151 = por %p149, %p150
      %p153 = scmp.ne.s32.totalorder %s136, %s152
      %p154 = scmp.eq.s32.totalorder %s23, 0
      %p155 = por %p153, %p154
      %s156 = ssub.s32 %s24, %s43
      %s157 = ssub.s32 %s25, %s39
      %s158 = sor.u32 %s156, %s157
      %p159 = scmp.eq.s32.totalorder %s158, 0
      %s161 = sadd.s32 %s160, 1
      %s162 = scalar_select %p159, %s160, %s161
      %p165 = pneg %p159
      %p166 = scmp.eq.s32.totalorder %s17, 1
      %p167 = por %p165, %p166
      %p168 = scmp.ne.s32.totalorder %s160, %s163
      %p169 = scmp.eq.s32.totalorder %s17, 0
      %p170 = por %p168, %p169
      %p171 = scmp.ne.s32.totalorder %s160, %s163
      %p172 = scmp.eq.s32.totalorder %s22, 1
      %p173 = por %p171, %p172
      %p174 = scmp.ne.s32.totalorder %s163, %s164
      %p175 = scmp.eq.s32.totalorder %s22, 0
      %p176 = por %p174, %p175
      %p177 = scmp.ne.s32.totalorder %s163, %s164
      %p178 = scmp.eq.s32.totalorder %s23, 1
      %p179 = por %p177, %p178
      %p181 = scmp.ne.s32.totalorder %s164, %s180
      %p182 = scmp.eq.s32.totalorder %s23, 0
      %p183 = por %p181, %p182
      %p184 = scmp.le.s32.totalorder 1, %s17
      %p185 = scmp.lt.s32.totalorder %s17, 3
      %p186 = pnand %p184, %p185
      %p187 = pneg %p186
      // Predicated region
      $region9: #{tpu_custom_call.1} parent=5 // pred_check
        _
      $region10: #{tpu_custom_call.1} parent=5 // pred_check_branch
        %189 = sbr.rel (%p186) target = $region12
      $region11: #{tpu_custom_call.1} parent=5 // pred_region
        %s190 = ssub.s32 %s17, 1
        // Predicated region
        $region13: #{tpu_custom_call.1} parent=11 // pred_check
          %p191 = pneg %p92
        $region14: #{tpu_custom_call.1} parent=11 // pred_check_branch
          %193 = sbr.rel (%p191) target = $region16
        $region15: #{tpu_custom_call.1} parent=11 // pred_region
          %s194 = smul.u32 4, %s29
          %p195 = scmp.lt.s32.totalorder %s194, 3
          %s196 = scalar_select %p195, %s194, 3
          %p197 = scmp.lt.s32.totalorder %s28, 0
          %s198 = scalar_select %p197, %s28, 0
          %s199 = sadd.s32 %s198, %s196
          %s200 = smul.addr %s199, 4
          %s201 = scalar_lea.vmem %s1, %s200
          %s202 = smul.u32 4, %s29
        $region16: #{tpu_custom_call.1} parent=11 // pred_fallthru
          _
      $region12: #{tpu_custom_call.1} parent=5 // pred_fallthru
        _
      %p203 = scmp.lt.s32.totalorder %s17, 2
      // Predicated region
      $region17: #{tpu_custom_call.1} parent=5 // pred_check
        %p204 = pneg %p203
      $region18: #{tpu_custom_call.1} parent=5 // pred_check_branch
        %206 = sbr.rel (%p204) target = $region20
      $region19: #{tpu_custom_call.1} parent=5 // pred_region
        // Predicated region
        $region21: #{tpu_custom_call.1} parent=19 // pred_check
          %p207 = pneg %p58
        $region22: #{tpu_custom_call.1} parent=19 // pred_check_branch
          %209 = sbr.rel (%p207) target = $region24
        $region23: #{tpu_custom_call.1} parent=19 // pred_region
          %s210 = smul.u32 32, %s24
          %p211 = scmp.lt.s32.totalorder %s210, 63
          %s212 = scalar_select %p211, %s210, 63
          %p213 = scmp.lt.s32.totalorder %s26, 0
          %s214 = scalar_select %p213, %s26, 0
          %s215 = sadd.s32 %s214, %s212
          %s216 = smul.addr %s215, 4
          %s217 = scalar_lea.vmem %s0, %s216
          %s218 = smul.u32 32, %s24
        $region24: #{tpu_custom_call.1} parent=19 // pred_fallthru
          _
      $region20: #{tpu_custom_call.1} parent=5 // pred_fallthru
        _
      %p219 = scmp.le.s32.totalorder 1, %s17
      %p220 = scmp.lt.s32.totalorder %s17, 3
      %p221 = pnand %p219, %p220
      %p222 = pneg %p221
      // Predicated region
      $region25: #{tpu_custom_call.1} parent=5 // pred_check
        _
      $region26: #{tpu_custom_call.1} parent=5 // pred_check_branch
        %224 = sbr.rel (%p221) target = $region28
      $region27: #{tpu_custom_call.1} parent=5 // pred_region
        %s225 = ssub.s32 %s17, 1
        %s226 = smul.u32 32, %s27
        %p227 = scmp.lt.s32.totalorder %s226, 63
        %s228 = scalar_select %p227, %s226, 63
        %p229 = scmp.lt.s32.totalorder %s29, 0
        %s230 = scalar_select %p229, %s29, 0
        %s231 = sadd.s32 %s230, %s228
        %s232 = smul.addr %s231, 4
        %s233 = scalar_lea.vmem %s0, %s232
        %p234 = pneg %p64
        %p235 = pneg %p61
        %s236 = smul.u32 4, %s29
        %p237 = scmp.lt.s32.totalorder %s236, 3
        %s238 = scalar_select %p237, %s236, 3
        %p239 = scmp.lt.s32.totalorder %s28, 0
        %s240 = scalar_select %p239, %s28, 0
        %s241 = sadd.s32 %s240, %s238
        %s242 = smul.addr %s241, 4
        %s243 = scalar_lea.vmem %s1, %s242
        %p244 = pneg %p92
        %p245 = pneg %p89
        %p246 = pneg %p120
        %p247 = pneg %p117
        %s248 = smul.u32 32, %s27
        %p249 = scmp.lt.s32.totalorder %s248, 63
        %s250 = scalar_select %p249, %s248, 63
        %p251 = scmp.lt.s32.totalorder %s28, 0
        %s252 = scalar_select %p251, %s28, 0
        %s253 = sadd.s32 %s252, %s250
        %s254 = smul.addr %s253, 4
        %s255 = scalar_lea.vmem %s2, %s254
        %p256 = pneg %p148
        %p257 = pneg %p145
        %s258 = sand.u32 %s135, 1
        %s259 = scalar_lea.sflag [#allocation4], %s258
        %s260 = sand.u32 %s135, 1
        %s261 = scalar_lea.vmem [#allocation3], %s260
        %p262 = pneg %p176
        %p263 = pneg %p173
        %s264 = sand.u32 %s163, 1
        %s265 = scalar_lea.sflag [#allocation6], %s264
        %s266 = sand.u32 %s163, 1
        %s267 = scalar_lea.vmem [#allocation5], %s266
        %s268 = smul.u32 32, %s27
        %p269 = scmp.lt.s32.totalorder %s268, 63
        %s270 = scalar_select %p269, %s268, 63
        %p271 = scmp.lt.s32.totalorder %s29, 0
        %s272 = scalar_select %p271, %s29, 0
        %s273 = sadd.s32 %s272, %s270
        %s274 = smul.addr %s273, 4
        %s275 = scalar_lea.vmem %s0, %s274
        %s276 = smul.u32 32, %s27
        %s277 = smul.u32 4, %s29
        %p278 = scmp.lt.s32.totalorder %s277, 3
        %s279 = scalar_select %p278, %s277, 3
        %p280 = scmp.lt.s32.totalorder %s28, 0
        %s281 = scalar_select %p280, %s28, 0
        %s282 = sadd.s32 %s281, %s279
        %s283 = smul.addr %s282, 4
        %s284 = scalar_lea.vmem %s1, %s283
        %s285 = smul.u32 4, %s29
        %s286 = smul.u32 32, %s27
        %p287 = scmp.lt.s32.totalorder %s286, 63
        %s288 = scalar_select %p287, %s286, 63
        %p289 = scmp.lt.s32.totalorder %s28, 0
        %s290 = scalar_select %p289, %s28, 0
        %s291 = sadd.s32 %s290, %s288
        %s292 = smul.addr %s291, 4
        %s293 = scalar_lea.vmem %s2, %s292
        %s294 = smul.u32 32, %s27
        %p296 = scmp.eq.s32.totalorder %s29, 0
        // Predicated region
        $region29: #{tpu_custom_call.1} parent=27 // pred_check
          %p297 = pneg %p296
        $region30: #{tpu_custom_call.1} parent=27 // pred_check_branch
          %299 = sbr.rel (%p297) target = $region32
        $region31: #{tpu_custom_call.1} parent=27 // pred_region
          %vm300 = vcmask 261120
          %301 = vst.msk [vmem:[#allocation2] sm:$0xff] %vm300, 0.0
          %302 = vst.msk [vmem:[#allocation2 + $0x8] sm:$0xff] %vm300, 0.0
          %303 = vst.msk [vmem:[#allocation2 + $0x10] sm:$0xff] %vm300, 0.0
          %304 = vst.msk [vmem:[#allocation2 + $0x18] sm:$0xff] %vm300, 0.0
          %305 = vst.msk [vmem:[#allocation2 + $0x20] sm:$0xff] %vm300, 0.0
          %306 = vst.msk [vmem:[#allocation2 + $0x28] sm:$0xff] %vm300, 0.0
          %307 = vst.msk [vmem:[#allocation2 + $0x30] sm:$0xff] %vm300, 0.0
          %308 = vst.msk [vmem:[#allocation2 + $0x38] sm:$0xff] %vm300, 0.0
          %309 = vst.msk [vmem:[#allocation2 + $0x40] sm:$0xff] %vm300, 0.0
          %310 = vst.msk [vmem:[#allocation2 + $0x48] sm:$0xff] %vm300, 0.0
          %311 = vst.msk [vmem:[#allocation2 + $0x50] sm:$0xff] %vm300, 0.0
          %312 = vst.msk [vmem:[#allocation2 + $0x58] sm:$0xff] %vm300, 0.0
          %313 = vst.msk [vmem:[#allocation2 + $0x60] sm:$0xff] %vm300, 0.0
          %314 = vst.msk [vmem:[#allocation2 + $0x68] sm:$0xff] %vm300, 0.0
          %315 = vst.msk [vmem:[#allocation2 + $0x70] sm:$0xff] %vm300, 0.0
          %316 = vst.msk [vmem:[#allocation2 + $0x78] sm:$0xff] %vm300, 0.0
          %317 = vst.msk [vmem:[#allocation2 + $0x80] sm:$0xff] %vm300, 0.0
          %318 = vst.msk [vmem:[#allocation2 + $0x88] sm:$0xff] %vm300, 0.0
          %319 = vst.msk [vmem:[#allocation2 + $0x90] sm:$0xff] %vm300, 0.0
          %320 = vst.msk [vmem:[#allocation2 + $0x98] sm:$0xff] %vm300, 0.0
          %321 = vst.msk [vmem:[#allocation2 + $0xa0] sm:$0xff] %vm300, 0.0
          %322 = vst.msk [vmem:[#allocation2 + $0xa8] sm:$0xff] %vm300, 0.0
          %323 = vst.msk [vmem:[#allocation2 + $0xb0] sm:$0xff] %vm300, 0.0
          %324 = vst.msk [vmem:[#allocation2 + $0xb8] sm:$0xff] %vm300, 0.0
          %325 = vst.msk [vmem:[#allocation2 + $0xc0] sm:$0xff] %vm300, 0.0
          %326 = vst.msk [vmem:[#allocation2 + $0xc8] sm:$0xff] %vm300, 0.0
          %327 = vst.msk [vmem:[#allocation2 + $0xd0] sm:$0xff] %vm300, 0.0
          %328 = vst.msk [vmem:[#allocation2 + $0xd8] sm:$0xff] %vm300, 0.0
          %329 = vst.msk [vmem:[#allocation2 + $0xe0] sm:$0xff] %vm300, 0.0
          %330 = vst.msk [vmem:[#allocation2 + $0xe8] sm:$0xff] %vm300, 0.0
          %331 = vst.msk [vmem:[#allocation2 + $0xf0] sm:$0xff] %vm300, 0.0
          %332 = vst.msk [vmem:[#allocation2 + $0xf8] sm:$0xff] %vm300, 0.0
        $region32: #{tpu_custom_call.1} parent=27 // pred_fallthru
          _
        %v333 = vld [vmem:[#allocation2] sm:$0xff]
        %v334 = vld [vmem:[#allocation2 + $0x8] sm:$0xff]
        %v335 = vld [vmem:[#allocation2 + $0x10] sm:$0xff]
        %v336 = vld [vmem:[#allocation2 + $0x18] sm:$0xff]
        %v337 = vld [vmem:[#allocation2 + $0x20] sm:$0xff]
        %v338 = vld [vmem:[#allocation2 + $0x28] sm:$0xff]
        %v339 = vld [vmem:[#allocation2 + $0x30] sm:$0xff]
        %v340 = vld [vmem:[#allocation2 + $0x38] sm:$0xff]
        %v341 = vld [vmem:[#allocation2 + $0x40] sm:$0xff]
        %v342 = vld [vmem:[#allocation2 + $0x48] sm:$0xff]
        %v343 = vld [vmem:[#allocation2 + $0x50] sm:$0xff]
        %v344 = vld [vmem:[#allocation2 + $0x58] sm:$0xff]
        %v345 = vld [vmem:[#allocation2 + $0x60] sm:$0xff]
        %v346 = vld [vmem:[#allocation2 + $0x68] sm:$0xff]
        %v347 = vld [vmem:[#allocation2 + $0x70] sm:$0xff]
        %v348 = vld [vmem:[#allocation2 + $0x78] sm:$0xff]
        %v349 = vld [vmem:[#allocation2 + $0x80] sm:$0xff]
        %v350 = vld [vmem:[#allocation2 + $0x88] sm:$0xff]
        %v351 = vld [vmem:[#allocation2 + $0x90] sm:$0xff]
        %v352 = vld [vmem:[#allocation2 + $0x98] sm:$0xff]
        %v353 = vld [vmem:[#allocation2 + $0xa0] sm:$0xff]
        %v354 = vld [vmem:[#allocation2 + $0xa8] sm:$0xff]
        %v355 = vld [vmem:[#allocation2 + $0xb0] sm:$0xff]
        %v356 = vld [vmem:[#allocation2 + $0xb8] sm:$0xff]
        %v357 = vld [vmem:[#allocation2 + $0xc0] sm:$0xff]
        %v358 = vld [vmem:[#allocation2 + $0xc8] sm:$0xff]
        %v359 = vld [vmem:[#allocation2 + $0xd0] sm:$0xff]
        %v360 = vld [vmem:[#allocation2 + $0xd8] sm:$0xff]
        %v361 = vld [vmem:[#allocation2 + $0xe0] sm:$0xff]
        %v362 = vld [vmem:[#allocation2 + $0xe8] sm:$0xff]
        %v363 = vld [vmem:[#allocation2 + $0xf0] sm:$0xff]
        %v364 = vld [vmem:[#allocation2 + $0xf8] sm:$0xff]
        %v365 = vld [vmem:[%s275] sm:$0xf]
        %v366 = vld [vmem:[%s275 + $0x4] sm:$0xf]
        %v367 = vld [vmem:[%s275 + $0x8] sm:$0xf]
        %v368 = vld [vmem:[%s275 + $0xc] sm:$0xf]
        %v369 = vld [vmem:[%s275 + $0x10] sm:$0xf]
        %v370 = vld [vmem:[%s275 + $0x14] sm:$0xf]
        %v371 = vld [vmem:[%s275 + $0x18] sm:$0xf]
        %v372 = vld [vmem:[%s275 + $0x1c] sm:$0xf]
        %v373 = vld [vmem:[%s275 + $0x20] sm:$0xf]
        %v374 = vld [vmem:[%s275 + $0x24] sm:$0xf]
        %v375 = vld [vmem:[%s275 + $0x28] sm:$0xf]
        %v376 = vld [vmem:[%s275 + $0x2c] sm:$0xf]
        %v377 = vld [vmem:[%s275 + $0x30] sm:$0xf]
        %v378 = vld [vmem:[%s275 + $0x34] sm:$0xf]
        %v379 = vld [vmem:[%s275 + $0x38] sm:$0xf]
        %v380 = vld [vmem:[%s275 + $0x3c] sm:$0xf]
        %v381 = vld [vmem:[%s275 + $0x40] sm:$0xf]
        %v382 = vld [vmem:[%s275 + $0x44] sm:$0xf]
        %v383 = vld [vmem:[%s275 + $0x48] sm:$0xf]
        %v384 = vld [vmem:[%s275 + $0x4c] sm:$0xf]
        %v385 = vld [vmem:[%s275 + $0x50] sm:$0xf]
        %v386 = vld [vmem:[%s275 + $0x54] sm:$0xf]
        %v387 = vld [vmem:[%s275 + $0x58] sm:$0xf]
        %v388 = vld [vmem:[%s275 + $0x5c] sm:$0xf]
        %v389 = vld [vmem:[%s275 + $0x60] sm:$0xf]
        %v390 = vld [vmem:[%s275 + $0x64] sm:$0xf]
        %v391 = vld [vmem:[%s275 + $0x68] sm:$0xf]
        %v392 = vld [vmem:[%s275 + $0x6c] sm:$0xf]
        %v393 = vld [vmem:[%s275 + $0x70] sm:$0xf]
        %v394 = vld [vmem:[%s275 + $0x74] sm:$0xf]
        %v395 = vld [vmem:[%s275 + $0x78] sm:$0xf]
        %v396 = vld [vmem:[%s275 + $0x7c] sm:$0xf]
        %v397 = vld [vmem:[%s284] sm:$0xf]
        %v398 = vld [vmem:[%s284 + $0x4] sm:$0xf]
        %v399 = vld [vmem:[%s284 + $0x8] sm:$0xf]
        %v400 = vld [vmem:[%s284 + $0xc] sm:$0x3]
        %v433 = vunpack.c.l.b16 %v365
        %v434 = vunpack.c.l.b16 %v366
        %v435 = vunpack.c.l.b16 %v367
        %v436 = vunpack.c.l.b16 %v368
        %v437 = vunpack.c.l.b16 %v369
        %v438 = vunpack.c.l.b16 %v370
        %v439 = vunpack.c.l.b16 %v371
        %v440 = vunpack.c.l.b16 %v372
        %v441 = vunpack.c.l.b16 %v373
        %v442 = vunpack.c.l.b16 %v374
        %v443 = vunpack.c.l.b16 %v375
        %v444 = vunpack.c.l.b16 %v376
        %v445 = vunpack.c.l.b16 %v377
        %v446 = vunpack.c.l.b16 %v378
        %v447 = vunpack.c.l.b16 %v379
        %v448 = vunpack.c.l.b16 %v380
        %v449 = vunpack.c.l.b16 %v381
        %v450 = vunpack.c.l.b16 %v382
        %v451 = vunpack.c.l.b16 %v383
        %v452 = vunpack.c.l.b16 %v384
        %v453 = vunpack.c.l.b16 %v385
        %v454 = vunpack.c.l.b16 %v386
        %v455 = vunpack.c.l.b16 %v387
        %v456 = vunpack.c.l.b16 %v388
        %v457 = vunpack.c.l.b16 %v389
        %v458 = vunpack.c.l.b16 %v390
        %v459 = vunpack.c.l.b16 %v391
        %v460 = vunpack.c.l.b16 %v392
        %v461 = vunpack.c.l.b16 %v393
        %v462 = vunpack.c.l.b16 %v394
        %v463 = vunpack.c.l.b16 %v395
        %v464 = vunpack.c.l.b16 %v396
        %v465 = vpack.c.b16 %v434, %v433
        %v466 = vpack.c.b16 %v436, %v435
        %v467 = vpack.c.b16 %v438, %v437
        %v468 = vpack.c.b16 %v440, %v439
        %v469 = vpack.c.b16 %v442, %v441
        %v470 = vpack.c.b16 %v444, %v443
        %v471 = vpack.c.b16 %v446, %v445
        %v472 = vpack.c.b16 %v448, %v447
        %v473 = vpack.c.b16 %v450, %v449
        %v474 = vpack.c.b16 %v452, %v451
        %v475 = vpack.c.b16 %v454, %v453
        %v476 = vpack.c.b16 %v456, %v455
        %v477 = vpack.c.b16 %v458, %v457
        %v478 = vpack.c.b16 %v460, %v459
        %v479 = vpack.c.b16 %v462, %v461
        %v480 = vpack.c.b16 %v464, %v463
        %v485 = vunpack.c.l.b16 %v397
        %v486 = vunpack.c.l.b16 %v398
        %v487 = vunpack.c.l.b16 %v399
        %v488 = vunpack.c.l.b16 %v400
        %v489 = vpack.c.b16 %v486, %v485
        %v490 = vpack.c.b16 %v488, %v487
        %vm492 = vcmask 220160
        %v494 = vsel %vm492, %v465, 0
        %v497 = vsel %vm492, %v466, 0
        %v500 = vsel %vm492, %v467, 0
        %v503 = vsel %vm492, %v468, 0
        %v506 = vsel %vm492, %v469, 0
        %v509 = vsel %vm492, %v470, 0
        %v512 = vsel %vm492, %v471, 0
        %v515 = vsel %vm492, %v472, 0
        %v518 = vsel %vm492, %v473, 0
        %v521 = vsel %vm492, %v474, 0
        %v524 = vsel %vm492, %v475, 0
        %v527 = vsel %vm492, %v476, 0
        %v530 = vsel %vm492, %v477, 0
        %v533 = vsel %vm492, %v478, 0
        %v536 = vsel %vm492, %v479, 0
        %v539 = vsel %vm492, %v480, 0
        %vm541 = vcmask 1044480
        %vm542 = vcmask 1045504
        %v543 = vsel %vm541, 4294967295, 65535
        %v544 = vsel %vm542, %v543, 0
        %v546 = vand.u32 %v490, %v544
        %548 = vmatprep.subr.bf16.mxu0 0
        %549 = vmatpush1.bf16.msra.mxu0 %v489
        %550 = vmatprep.subr.bf16.mxu0 0
        %551 = vmatpush1.bf16.msra.mxu0 %v546
        %552 = vmatprep.subr.bf16.mxu0 0
        %553 = vmatpush1.bf16.msra.mxu0 0
        %554 = vmatprep.subr.bf16.mxu0 0
        %555 = vmatpush1.bf16.msra.mxu0 0
        %556 = vmatprep.subr.bf16.mxu0 0
        %557 = vmatpush1.bf16.msra.mxu0 0
        %558 = vmatprep.subr.bf16.mxu0 0
        %559 = vmatpush1.bf16.msra.mxu0 0
        %560 = vmatprep.subr.bf16.mxu0 0
        %561 = vmatpush1.bf16.msra.mxu0 0
        %562 = vmatprep.subr.bf16.mxu0 0
        %563 = vmatpush1.bf16.msra.mxu0 0
        %564 = vmatprep.subr.bf16.mxu0 0
        %565 = vmatpush1.bf16.msra.mxu0 0
        %566 = vmatprep.subr.bf16.mxu0 0
        %567 = vmatpush1.bf16.msra.mxu0 0
        %568 = vmatprep.subr.bf16.mxu0 0
        %569 = vmatpush1.bf16.msra.mxu0 0
        %570 = vmatprep.subr.bf16.mxu0 0
        %571 = vmatpush1.bf16.msra.mxu0 0
        %572 = vmatprep.subr.bf16.mxu0 0
        %573 = vmatpush1.bf16.msra.mxu0 0
        %574 = vmatprep.subr.bf16.mxu0 0
        %575 = vmatpush1.bf16.msra.mxu0 0
        %576 = vmatprep.subr.bf16.mxu0 0
        %577 = vmatpush1.bf16.msra.mxu0 0
        %578 = vmatprep.subr.bf16.mxu0 0
        %579 = vmatpush1.bf16.msra.mxu0 0
        %580 = vmatprep.mubr.bf16.mxu0 0
        %581 = vmatmul.mubr.bf16.gmra.mrb[0].mxu0 %v494
        %v582 = vpop.f32.mrb[0].mxu0
        %v583 = vadd.f32 0.0, %v582
        %v584 = vpop.f32.mrb[0].mxu0
        %v585 = vpop.f32.mrb[0].mxu0
        %v586 = vadd.f32 0.0, %v585
        %v587 = vpop.f32.mrb[0].mxu0
        %588 = vmatprep.mubr.bf16.mxu0 0
        %589 = vmatmul.mubr.bf16.gmra.mrb[0].mxu0 %v497
        %v590 = vpop.f32.mrb[0].mxu0
        %v591 = vadd.f32 0.0, %v590
        %v592 = vpop.f32.mrb[0].mxu0
        %v593 = vpop.f32.mrb[0].mxu0
        %v594 = vadd.f32 0.0, %v593
        %v595 = vpop.f32.mrb[0].mxu0
        %596 = vmatprep.mubr.bf16.mxu0 0
        %597 = vmatmul.mubr.bf16.gmra.mrb[0].mxu0 %v500
        %v598 = vpop.f32.mrb[0].mxu0
        %v599 = vadd.f32 0.0, %v598
        %v600 = vpop.f32.mrb[0].mxu0
        %v601 = vpop.f32.mrb[0].mxu0
        %v602 = vadd.f32 0.0, %v601
        %v603 = vpop.f32.mrb[0].mxu0
        %604 = vmatprep.mubr.bf16.mxu0 0
        %605 = vmatmul.mubr.bf16.gmra.mrb[0].mxu0 %v503
        %v606 = vpop.f32.mrb[0].mxu0
        %v607 = vadd.f32 0.0, %v606
        %v608 = vpop.f32.mrb[0].mxu0
        %v609 = vpop.f32.mrb[0].mxu0
        %v610 = vadd.f32 0.0, %v609
        %v611 = vpop.f32.mrb[0].mxu0
        %612 = vmatprep.mubr.bf16.mxu0 0
        %613 = vmatmul.mubr.bf16.gmra.mrb[0].mxu0 %v506
        %v614 = vpop.f32.mrb[0].mxu0
        %v615 = vadd.f32 0.0, %v614
        %v616 = vpop.f32.mrb[0].mxu0
        %v617 = vpop.f32.mrb[0].mxu0
        %v618 = vadd.f32 0.0, %v617
        %v619 = vpop.f32.mrb[0].mxu0
        %620 = vmatprep.mubr.bf16.mxu0 0
        %621 = vmatmul.mubr.bf16.gmra.mrb[0].mxu0 %v509
        %v622 = vpop.f32.mrb[0].mxu0
        %v623 = vadd.f32 0.0, %v622
        %v624 = vpop.f32.mrb[0].mxu0
        %v625 = vpop.f32.mrb[0].mxu0
        %v626 = vadd.f32 0.0, %v625
        %v627 = vpop.f32.mrb[0].mxu0
        %628 = vmatprep.mubr.bf16.mxu0 0
        %629 = vmatmul.mubr.bf16.gmra.mrb[0].mxu0 %v512
        %v630 = vpop.f32.mrb[0].mxu0
        %v631 = vadd.f32 0.0, %v630
        %v632 = vpop.f32.mrb[0].mxu0
        %v633 = vpop.f32.mrb[0].mxu0
        %v634 = vadd.f32 0.0, %v633
        %v635 = vpop.f32.mrb[0].mxu0
        %636 = vmatprep.mubr.bf16.mxu0 0
        %637 = vmatmul.mubr.bf16.gmra.mrb[0].mxu0 %v515
        %v638 = vpop.f32.mrb[0].mxu0
        %v639 = vadd.f32 0.0, %v638
        %v640 = vpop.f32.mrb[0].mxu0
        %v641 = vpop.f32.mrb[0].mxu0
        %v642 = vadd.f32 0.0, %v641
        %v643 = vpop.f32.mrb[0].mxu0
        %644 = vmatprep.mubr.bf16.mxu0 0
        %645 = vmatmul.mubr.bf16.gmra.mrb[0].mxu0 %v518
        %v646 = vpop.f32.mrb[0].mxu0
        %v647 = vadd.f32 0.0, %v646
        %v648 = vpop.f32.mrb[0].mxu0
        %v649 = vpop.f32.mrb[0].mxu0
        %v650 = vadd.f32 0.0, %v649
        %v651 = vpop.f32.mrb[0].mxu0
        %652 = vmatprep.mubr.bf16.mxu0 0
        %653 = vmatmul.mubr.bf16.gmra.mrb[0].mxu0 %v521
        %v654 = vpop.f32.mrb[0].mxu0
        %v655 = vadd.f32 0.0, %v654
        %v656 = vpop.f32.mrb[0].mxu0
        %v657 = vpop.f32.mrb[0].mxu0
        %v658 = vadd.f32 0.0, %v657
        %v659 = vpop.f32.mrb[0].mxu0
        %660 = vmatprep.mubr.bf16.mxu0 0
        %661 = vmatmul.mubr.bf16.gmra.mrb[0].mxu0 %v524
        %v662 = vpop.f32.mrb[0].mxu0
        %v663 = vadd.f32 0.0, %v662
        %v664 = vpop.f32.mrb[0].mxu0
        %v665 = vpop.f32.mrb[0].mxu0
        %v666 = vadd.f32 0.0, %v665
        %v667 = vpop.f32.mrb[0].mxu0
        %668 = vmatprep.mubr.bf16.mxu0 0
        %669 = vmatmul.mubr.bf16.gmra.mrb[0].mxu0 %v527
        %v670 = vpop.f32.mrb[0].mxu0
        %v671 = vadd.f32 0.0, %v670
        %v672 = vpop.f32.mrb[0].mxu0
        %v673 = vpop.f32.mrb[0].mxu0
        %v674 = vadd.f32 0.0, %v673
        %v675 = vpop.f32.mrb[0].mxu0
        %676 = vmatprep.mubr.bf16.mxu0 0
        %677 = vmatmul.mubr.bf16.gmra.mrb[0].mxu0 %v530
        %v678 = vpop.f32.mrb[0].mxu0
        %v679 = vadd.f32 0.0, %v678
        %v680 = vpop.f32.mrb[0].mxu0
        %v681 = vpop.f32.mrb[0].mxu0
        %v682 = vadd.f32 0.0, %v681
        %v683 = vpop.f32.mrb[0].mxu0
        %684 = vmatprep.mubr.bf16.mxu0 0
        %685 = vmatmul.mubr.bf16.gmra.mrb[0].mxu0 %v533
        %v686 = vpop.f32.mrb[0].mxu0
        %v687 = vadd.f32 0.0, %v686
        %v688 = vpop.f32.mrb[0].mxu0
        %v689 = vpop.f32.mrb[0].mxu0
        %v690 = vadd.f32 0.0, %v689
        %v691 = vpop.f32.mrb[0].mxu0
        %692 = vmatprep.mubr.bf16.mxu0 0
        %693 = vmatmul.mubr.bf16.gmra.mrb[0].mxu0 %v536
        %v694 = vpop.f32.mrb[0].mxu0
        %v695 = vadd.f32 0.0, %v694
        %v696 = vpop.f32.mrb[0].mxu0
        %v697 = vpop.f32.mrb[0].mxu0
        %v698 = vadd.f32 0.0, %v697
        %v699 = vpop.f32.mrb[0].mxu0
        %700 = vmatprep.mubr.bf16.mxu0 0
        %701 = vmatmul.mubr.bf16.gmra.mrb[0].mxu0 %v539
        %v702 = vpop.f32.mrb[0].mxu0
        %v703 = vadd.f32 0.0, %v702
        %v704 = vpop.f32.mrb[0].mxu0
        %v705 = vpop.f32.mrb[0].mxu0
        %v706 = vadd.f32 0.0, %v705
        %v707 = vpop.f32.mrb[0].mxu0
        %708 = vdwg.mxu0
        %v709 = vadd.f32 %v333, %v583
        %v710 = vadd.f32 %v334, %v586
        %v711 = vadd.f32 %v335, %v591
        %v712 = vadd.f32 %v336, %v594
        %v713 = vadd.f32 %v337, %v599
        %v714 = vadd.f32 %v338, %v602
        %v715 = vadd.f32 %v339, %v607
        %v716 = vadd.f32 %v340, %v610
        %v717 = vadd.f32 %v341, %v615
        %v718 = vadd.f32 %v342, %v618
        %v719 = vadd.f32 %v343, %v623
        %v720 = vadd.f32 %v344, %v626
        %v721 = vadd.f32 %v345, %v631
        %v722 = vadd.f32 %v346, %v634
        %v723 = vadd.f32 %v347, %v639
        %v724 = vadd.f32 %v348, %v642
        %v725 = vadd.f32 %v349, %v647
        %v726 = vadd.f32 %v350, %v650
        %v727 = vadd.f32 %v351, %v655
        %v728 = vadd.f32 %v352, %v658
        %v729 = vadd.f32 %v353, %v663
        %v730 = vadd.f32 %v354, %v666
        %v731 = vadd.f32 %v355, %v671
        %v732 = vadd.f32 %v356, %v674
        %v733 = vadd.f32 %v357, %v679
        %v734 = vadd.f32 %v358, %v682
        %v735 = vadd.f32 %v359, %v687
        %v736 = vadd.f32 %v360, %v690
        %v737 = vadd.f32 %v361, %v695
        %v738 = vadd.f32 %v362, %v698
        %v739 = vadd.f32 %v363, %v703
        %v740 = vadd.f32 %v364, %v706
        %vm741 = vcmask 261120
        %742 = vst.msk [vmem:[#allocation2] sm:$0xff] %vm741, %v709
        %743 = vst.msk [vmem:[#allocation2 + $0x8] sm:$0xff] %vm741, %v710
        %744 = vst.msk [vmem:[#allocation2 + $0x10] sm:$0xff] %vm741, %v711
        %745 = vst.msk [vmem:[#allocation2 + $0x18] sm:$0xff] %vm741, %v712
        %746 = vst.msk [vmem:[#allocation2 + $0x20] sm:$0xff] %vm741, %v713
        %747 = vst.msk [vmem:[#allocation2 + $0x28] sm:$0xff] %vm741, %v714
        %748 = vst.msk [vmem:[#allocation2 + $0x30] sm:$0xff] %vm741, %v715
        %749 = vst.msk [vmem:[#allocation2 + $0x38] sm:$0xff] %vm741, %v716
        %750 = vst.msk [vmem:[#allocation2 + $0x40] sm:$0xff] %vm741, %v717
        %751 = vst.msk [vmem:[#allocation2 + $0x48] sm:$0xff] %vm741, %v718
        %752 = vst.msk [vmem:[#allocation2 + $0x50] sm:$0xff] %vm741, %v719
        %753 = vst.msk [vmem:[#allocation2 + $0x58] sm:$0xff] %vm741, %v720
        %754 = vst.msk [vmem:[#allocation2 + $0x60] sm:$0xff] %vm741, %v721
        %755 = vst.msk [vmem:[#allocation2 + $0x68] sm:$0xff] %vm741, %v722
        %756 = vst.msk [vmem:[#allocation2 + $0x70] sm:$0xff] %vm741, %v723
        %757 = vst.msk [vmem:[#allocation2 + $0x78] sm:$0xff] %vm741, %v724
        %758 = vst.msk [vmem:[#allocation2 + $0x80] sm:$0xff] %vm741, %v725
        %759 = vst.msk [vmem:[#allocation2 + $0x88] sm:$0xff] %vm741, %v726
        %760 = vst.msk [vmem:[#allocation2 + $0x90] sm:$0xff] %vm741, %v727
        %761 = vst.msk [vmem:[#allocation2 + $0x98] sm:$0xff] %vm741, %v728
        %762 = vst.msk [vmem:[#allocation2 + $0xa0] sm:$0xff] %vm741, %v729
        %763 = vst.msk [vmem:[#allocation2 + $0xa8] sm:$0xff] %vm741, %v730
        %764 = vst.msk [vmem:[#allocation2 + $0xb0] sm:$0xff] %vm741, %v731
        %765 = vst.msk [vmem:[#allocation2 + $0xb8] sm:$0xff] %vm741, %v732
        %766 = vst.msk [vmem:[#allocation2 + $0xc0] sm:$0xff] %vm741, %v733
        %767 = vst.msk [vmem:[#allocation2 + $0xc8] sm:$0xff] %vm741, %v734
        %768 = vst.msk [vmem:[#allocation2 + $0xd0] sm:$0xff] %vm741, %v735
        %769 = vst.msk [vmem:[#allocation2 + $0xd8] sm:$0xff] %vm741, %v736
        %770 = vst.msk [vmem:[#allocation2 + $0xe0] sm:$0xff] %vm741, %v737
        %771 = vst.msk [vmem:[#allocation2 + $0xe8] sm:$0xff] %vm741, %v738
        %772 = vst.msk [vmem:[#allocation2 + $0xf0] sm:$0xff] %vm741, %v739
        %773 = vst.msk [vmem:[#allocation2 + $0xf8] sm:$0xff] %vm741, %v740
        // Predicated region
        $region33: #{tpu_custom_call.1} parent=27 // pred_check
          %p774 = pneg %p296
        $region34: #{tpu_custom_call.1} parent=27 // pred_check_branch
          %776 = sbr.rel (%p774) target = $region36
        $region35: #{tpu_custom_call.1} parent=27 // pred_region
          %v777 = vld [vmem:[#allocation2] sm:$0xff]
          %v778 = vld [vmem:[#allocation2 + $0x8] sm:$0xff]
          %v779 = vld [vmem:[#allocation2 + $0x10] sm:$0xff]
          %v780 = vld [vmem:[#allocation2 + $0x18] sm:$0xff]
          %v781 = vld [vmem:[#allocation2 + $0x20] sm:$0xff]
          %v782 = vld [vmem:[#allocation2 + $0x28] sm:$0xff]
          %v783 = vld [vmem:[#allocation2 + $0x30] sm:$0xff]
          %v784 = vld [vmem:[#allocation2 + $0x38] sm:$0xff]
          %v785 = vld [vmem:[#allocation2 + $0x40] sm:$0xff]
          %v786 = vld [vmem:[#allocation2 + $0x48] sm:$0xff]
          %v787 = vld [vmem:[#allocation2 + $0x50] sm:$0xff]
          %v788 = vld [vmem:[#allocation2 + $0x58] sm:$0xff]
          %v789 = vld [vmem:[#allocation2 + $0x60] sm:$0xff]
          %v790 = vld [vmem:[#allocation2 + $0x68] sm:$0xff]
          %v791 = vld [vmem:[#allocation2 + $0x70] sm:$0xff]
          %v792 = vld [vmem:[#allocation2 + $0x78] sm:$0xff]
          %v793 = vld [vmem:[#allocation2 + $0x80] sm:$0xff]
          %v794 = vld [vmem:[#allocation2 + $0x88] sm:$0xff]
          %v795 = vld [vmem:[#allocation2 + $0x90] sm:$0xff]
          %v796 = vld [vmem:[#allocation2 + $0x98] sm:$0xff]
          %v797 = vld [vmem:[#allocation2 + $0xa0] sm:$0xff]
          %v798 = vld [vmem:[#allocation2 + $0xa8] sm:$0xff]
          %v799 = vld [vmem:[#allocation2 + $0xb0] sm:$0xff]
          %v800 = vld [vmem:[#allocation2 + $0xb8] sm:$0xff]
          %v801 = vld [vmem:[#allocation2 + $0xc0] sm:$0xff]
          %v802 = vld [vmem:[#allocation2 + $0xc8] sm:$0xff]
          %v803 = vld [vmem:[#allocation2 + $0xd0] sm:$0xff]
          %v804 = vld [vmem:[#allocation2 + $0xd8] sm:$0xff]
          %v805 = vld [vmem:[#allocation2 + $0xe0] sm:$0xff]
          %v806 = vld [vmem:[#allocation2 + $0xe8] sm:$0xff]
          %v807 = vld [vmem:[#allocation2 + $0xf0] sm:$0xff]
          %v808 = vld [vmem:[#allocation2 + $0xf8] sm:$0xff]
          %v809 = vpack.c.bf16 %v778, %v777
          %v810 = vpack.c.bf16 %v780, %v779
          %v811 = vpack.c.bf16 %v782, %v781
          %v812 = vpack.c.bf16 %v784, %v783
          %v813 = vpack.c.bf16 %v786, %v785
          %v814 = vpack.c.bf16 %v788, %v787
          %v815 = vpack.c.bf16 %v790, %v789
          %v816 = vpack.c.bf16 %v792, %v791
          %v817 = vpack.c.bf16 %v794, %v793
          %v818 = vpack.c.bf16 %v796, %v795
          %v819 = vpack.c.bf16 %v798, %v797
          %v820 = vpack.c.bf16 %v800, %v799
          %v821 = vpack.c.bf16 %v802, %v801
          %v822 = vpack.c.bf16 %v804, %v803
          %v823 = vpack.c.bf16 %v806, %v805
          %v824 = vpack.c.bf16 %v808, %v807
          %v841 = vunpack.c.l.b16 %v809
          %v842 = vunpack.c.h.b16 %v809
          %v843 = vunpack.c.l.b16 %v810
          %v844 = vunpack.c.h.b16 %v810
          %v845 = vunpack.c.l.b16 %v811
          %v846 = vunpack.c.h.b16 %v811
          %v847 = vunpack.c.l.b16 %v812
          %v848 = vunpack.c.h.b16 %v812
          %v849 = vunpack.c.l.b16 %v813
          %v850 = vunpack.c.h.b16 %v813
          %v851 = vunpack.c.l.b16 %v814
          %v852 = vunpack.c.h.b16 %v814
          %v853 = vunpack.c.l.b16 %v815
          %v854 = vunpack.c.h.b16 %v815
          %v855 = vunpack.c.l.b16 %v816
          %v856 = vunpack.c.h.b16 %v816
          %v857 = vunpack.c.l.b16 %v817
          %v858 = vunpack.c.h.b16 %v817
          %v859 = vunpack.c.l.b16 %v818
          %v860 = vunpack.c.h.b16 %v818
          %v861 = vunpack.c.l.b16 %v819
          %v862 = vunpack.c.h.b16 %v819
          %v863 = vunpack.c.l.b16 %v820
          %v864 = vunpack.c.h.b16 %v820
          %v865 = vunpack.c.l.b16 %v821
          %v866 = vunpack.c.h.b16 %v821
          %v867 = vunpack.c.l.b16 %v822
          %v868 = vunpack.c.h.b16 %v822
          %v869 = vunpack.c.l.b16 %v823
          %v870 = vunpack.c.h.b16 %v823
          %v871 = vunpack.c.l.b16 %v824
          %v872 = vunpack.c.h.b16 %v824
          %v873 = vpack.c.b16 %v841, %v841
          %v874 = vpack.c.b16 %v842, %v842
          %v875 = vpack.c.b16 %v843, %v843
          %v876 = vpack.c.b16 %v844, %v844
          %v877 = vpack.c.b16 %v845, %v845
          %v878 = vpack.c.b16 %v846, %v846
          %v879 = vpack.c.b16 %v847, %v847
          %v880 = vpack.c.b16 %v848, %v848
          %v881 = vpack.c.b16 %v849, %v849
          %v882 = vpack.c.b16 %v850, %v850
          %v883 = vpack.c.b16 %v851, %v851
          %v884 = vpack.c.b16 %v852, %v852
          %v885 = vpack.c.b16 %v853, %v853
          %v886 = vpack.c.b16 %v854, %v854
          %v887 = vpack.c.b16 %v855, %v855
          %v888 = vpack.c.b16 %v856, %v856
          %v889 = vpack.c.b16 %v857, %v857
          %v890 = vpack.c.b16 %v858, %v858
          %v891 = vpack.c.b16 %v859, %v859
          %v892 = vpack.c.b16 %v860, %v860
          %v893 = vpack.c.b16 %v861, %v861
          %v894 = vpack.c.b16 %v862, %v862
          %v895 = vpack.c.b16 %v863, %v863
          %v896 = vpack.c.b16 %v864, %v864
          %v897 = vpack.c.b16 %v865, %v865
          %v898 = vpack.c.b16 %v866, %v866
          %v899 = vpack.c.b16 %v867, %v867
          %v900 = vpack.c.b16 %v868, %v868
          %v901 = vpack.c.b16 %v869, %v869
          %v902 = vpack.c.b16 %v870, %v870
          %v903 = vpack.c.b16 %v871, %v871
          %v904 = vpack.c.b16 %v872, %v872
          %vm937 = vcmask 257024
          %938 = vst.msk [vmem:[%s293] sm:$0xf] %vm937, %v873
          %939 = vst.msk [vmem:[%s293 + $0x4] sm:$0xf] %vm937, %v874
          %940 = vst.msk [vmem:[%s293 + $0x8] sm:$0xf] %vm937, %v875
          %941 = vst.msk [vmem:[%s293 + $0xc] sm:$0xf] %vm937, %v876
          %942 = vst.msk [vmem:[%s293 + $0x10] sm:$0xf] %vm937, %v877
          %943 = vst.msk [vmem:[%s293 + $0x14] sm:$0xf] %vm937, %v878
          %944 = vst.msk [vmem:[%s293 + $0x18] sm:$0xf] %vm937, %v879
          %945 = vst.msk [vmem:[%s293 + $0x1c] sm:$0xf] %vm937, %v880
          %946 = vst.msk [vmem:[%s293 + $0x20] sm:$0xf] %vm937, %v881
          %947 = vst.msk [vmem:[%s293 + $0x24] sm:$0xf] %vm937, %v882
          %948 = vst.msk [vmem:[%s293 + $0x28] sm:$0xf] %vm937, %v883
          %949 = vst.msk [vmem:[%s293 + $0x2c] sm:$0xf] %vm937, %v884
          %950 = vst.msk [vmem:[%s293 + $0x30] sm:$0xf] %vm937, %v885
          %951 = vst.msk [vmem:[%s293 + $0x34] sm:$0xf] %vm937, %v886
          %952 = vst.msk [vmem:[%s293 + $0x38] sm:$0xf] %vm937, %v887
          %953 = vst.msk [vmem:[%s293 + $0x3c] sm:$0xf] %vm937, %v888
          %954 = vst.msk [vmem:[%s293 + $0x40] sm:$0xf] %vm937, %v889
          %955 = vst.msk [vmem:[%s293 + $0x44] sm:$0xf] %vm937, %v890
          %956 = vst.msk [vmem:[%s293 + $0x48] sm:$0xf] %vm937, %v891
          %957 = vst.msk [vmem:[%s293 + $0x4c] sm:$0xf] %vm937, %v892
          %958 = vst.msk [vmem:[%s293 + $0x50] sm:$0xf] %vm937, %v893
          %959 = vst.msk [vmem:[%s293 + $0x54] sm:$0xf] %vm937, %v894
          %960 = vst.msk [vmem:[%s293 + $0x58] sm:$0xf] %vm937, %v895
          %961 = vst.msk [vmem:[%s293 + $0x5c] sm:$0xf] %vm937, %v896
          %962 = vst.msk [vmem:[%s293 + $0x60] sm:$0xf] %vm937, %v897
          %963 = vst.msk [vmem:[%s293 + $0x64] sm:$0xf] %vm937, %v898
          %964 = vst.msk [vmem:[%s293 + $0x68] sm:$0xf] %vm937, %v899
          %965 = vst.msk [vmem:[%s293 + $0x6c] sm:$0xf] %vm937, %v900
          %966 = vst.msk [vmem:[%s293 + $0x70] sm:$0xf] %vm937, %v901
          %967 = vst.msk [vmem:[%s293 + $0x74] sm:$0xf] %vm937, %v902
          %968 = vst.msk [vmem:[%s293 + $0x78] sm:$0xf] %vm937, %v903
          %969 = vst.msk [vmem:[%s293 + $0x7c] sm:$0xf] %vm937, %v904
          %v970 = vsel %vm741, %v777, 0.0
          %v971 = vsel %vm741, %v778, 0.0
          %v972 = vadd.f32 %v970, %v971
          %v973 = vsel %vm741, %v779, 0.0
          %v974 = vadd.f32 %v972, %v973
          %v975 = vsel %vm741, %v780, 0.0
          %v976 = vadd.f32 %v974, %v975
          %v977 = vsel %vm741, %v781, 0.0
          %v978 = vadd.f32 %v976, %v977
          %v979 = vsel %vm741, %v782, 0.0
          %v980 = vadd.f32 %v978, %v979
          %v981 = vsel %vm741, %v783, 0.0
          %v982 = vadd.f32 %v980, %v981
          %v983 = vsel %vm741, %v784, 0.0
          %v984 = vadd.f32 %v982, %v983
          %v985 = vsel %vm741, %v785, 0.0
          %v986 = vadd.f32 %v984, %v985
          %v987 = vsel %vm741, %v786, 0.0
          %v988 = vadd.f32 %v986, %v987
          %v989 = vsel %vm741, %v787, 0.0
          %v990 = vadd.f32 %v988, %v989
          %v991 = vsel %vm741, %v788, 0.0
          %v992 = vadd.f32 %v990, %v991
          %v993 = vsel %vm741, %v789, 0.0
          %v994 = vadd.f32 %v992, %v993
          %v995 = vsel %vm741, %v790, 0.0
          %v996 = vadd.f32 %v994, %v995
          %v997 = vsel %vm741, %v791, 0.0
          %v998 = vadd.f32 %v996, %v997
          %v999 = vsel %vm741, %v792, 0.0
          %v1000 = vadd.f32 %v998, %v999
          %v1001 = vsel %vm741, %v793, 0.0
          %v1002 = vadd.f32 %v1000, %v1001
          %v1003 = vsel %vm741, %v794, 0.0
          %v1004 = vadd.f32 %v1002, %v1003
          %v1005 = vsel %vm741, %v795, 0.0
          %v1006 = vadd.f32 %v1004, %v1005
          %v1007 = vsel %vm741, %v796, 0.0
          %v1008 = vadd.f32 %v1006, %v1007
          %v1009 = vsel %vm741, %v797, 0.0
          %v1010 = vadd.f32 %v1008, %v1009
          %v1011 = vsel %vm741, %v798, 0.0
          %v1012 = vadd.f32 %v1010, %v1011
          %v1013 = vsel %vm741, %v799, 0.0
          %v1014 = vadd.f32 %v1012, %v1013
          %v1015 = vsel %vm741, %v800, 0.0
          %v1016 = vadd.f32 %v1014, %v1015
          %v1017 = vsel %vm741, %v801, 0.0
          %v1018 = vadd.f32 %v1016, %v1017
          %v1019 = vsel %vm741, %v802, 0.0
          %v1020 = vadd.f32 %v1018, %v1019
          %v1021 = vsel %vm741, %v803, 0.0
          %v1022 = vadd.f32 %v1020, %v1021
          %v1023 = vsel %vm741, %v804, 0.0
          %v1024 = vadd.f32 %v1022, %v1023
          %v1025 = vsel %vm741, %v805, 0.0
          %v1026 = vadd.f32 %v1024, %v1025
          %v1027 = vsel %vm741, %v806, 0.0
          %v1028 = vadd.f32 %v1026, %v1027
          %v1029 = vsel %vm741, %v807, 0.0
          %v1030 = vadd.f32 %v1028, %v1029
          %v1031 = vsel %vm741, %v808, 0.0
          %v1032 = vadd.f32 %v1030, %v1031
          %v1033 = vrot.slane %v1032, 4
          %v1034 = vadd.f32 %v1032, %v1033
          %v1035 = vrot.slane %v1034, 2
          %v1036 = vadd.f32 %v1034, %v1035
          %v1037 = vrot.slane %v1036, 1
          %v1038 = vadd.f32 %v1036, %v1037
          %vm1039 = vcmask 253952
          %1040 = vst.msk [vmem:[%s261] sm:$0x1] %vm1039, %v1038
          %v1041 = vmul.f32 %v777, %v777
          %v1042 = vmul.f32 %v778, %v778
          %v1043 = vmul.f32 %v779, %v779
          %v1044 = vmul.f32 %v780, %v780
          %v1045 = vmul.f32 %v781, %v781
          %v1046 = vmul.f32 %v782, %v782
          %v1047 = vmul.f32 %v783, %v783
          %v1048 = vmul.f32 %v784, %v784
          %v1049 = vmul.f32 %v785, %v785
          %v1050 = vmul.f32 %v786, %v786
          %v1051 = vmul.f32 %v787, %v787
          %v1052 = vmul.f32 %v788, %v788
          %v1053 = vmul.f32 %v789, %v789
          %v1054 = vmul.f32 %v790, %v790
          %v1055 = vmul.f32 %v791, %v791
          %v1056 = vmul.f32 %v792, %v792
          %v1057 = vmul.f32 %v793, %v793
          %v1058 = vmul.f32 %v794, %v794
          %v1059 = vmul.f32 %v795, %v795
          %v1060 = vmul.f32 %v796, %v796
          %v1061 = vmul.f32 %v797, %v797
          %v1062 = vmul.f32 %v798, %v798
          %v1063 = vmul.f32 %v799, %v799
          %v1064 = vmul.f32 %v800, %v800
          %v1065 = vmul.f32 %v801, %v801
          %v1066 = vmul.f32 %v802, %v802
          %v1067 = vmul.f32 %v803, %v803
          %v1068 = vmul.f32 %v804, %v804
          %v1069 = vmul.f32 %v805, %v805
          %v1070 = vmul.f32 %v806, %v806
          %v1071 = vmul.f32 %v807, %v807
          %v1072 = vmul.f32 %v808, %v808
          %v1073 = vsel %vm741, %v1041, 0.0
          %v1074 = vsel %vm741, %v1042, 0.0
          %v1075 = vadd.f32 %v1073, %v1074
          %v1076 = vsel %vm741, %v1043, 0.0
          %v1077 = vadd.f32 %v1075, %v1076
          %v1078 = vsel %vm741, %v1044, 0.0
          %v1079 = vadd.f32 %v1077, %v1078
          %v1080 = vsel %vm741, %v1045, 0.0
          %v1081 = vadd.f32 %v1079, %v1080
          %v1082 = vsel %vm741, %v1046, 0.0
          %v1083 = vadd.f32 %v1081, %v1082
          %v1084 = vsel %vm741, %v1047, 0.0
          %v1085 = vadd.f32 %v1083, %v1084
          %v1086 = vsel %vm741, %v1048, 0.0
          %v1087 = vadd.f32 %v1085, %v1086
          %v1088 = vsel %vm741, %v1049, 0.0
          %v1089 = vadd.f32 %v1087, %v1088
          %v1090 = vsel %vm741, %v1050, 0.0
          %v1091 = vadd.f32 %v1089, %v1090
          %v1092 = vsel %vm741, %v1051, 0.0
          %v1093 = vadd.f32 %v1091, %v1092
          %v1094 = vsel %vm741, %v1052, 0.0
          %v1095 = vadd.f32 %v1093, %v1094
          %v1096 = vsel %vm741, %v1053, 0.0
          %v1097 = vadd.f32 %v1095, %v1096
          %v1098 = vsel %vm741, %v1054, 0.0
          %v1099 = vadd.f32 %v1097, %v1098
          %v1100 = vsel %vm741, %v1055, 0.0
          %v1101 = vadd.f32 %v1099, %v1100
          %v1102 = vsel %vm741, %v1056, 0.0
          %v1103 = vadd.f32 %v1101, %v1102
          %v1104 = vsel %vm741, %v1057, 0.0
          %v1105 = vadd.f32 %v1103, %v1104
          %v1106 = vsel %vm741, %v1058, 0.0
          %v1107 = vadd.f32 %v1105, %v1106
          %v1108 = vsel %vm741, %v1059, 0.0
          %v1109 = vadd.f32 %v1107, %v1108
          %v1110 = vsel %vm741, %v1060, 0.0
          %v1111 = vadd.f32 %v1109, %v1110
          %v1112 = vsel %vm741, %v1061, 0.0
          %v1113 = vadd.f32 %v1111, %v1112
          %v1114 = vsel %vm741, %v1062, 0.0
          %v1115 = vadd.f32 %v1113, %v1114
          %v1116 = vsel %vm741, %v1063, 0.0
          %v1117 = vadd.f32 %v1115, %v1116
          %v1118 = vsel %vm741, %v1064, 0.0
          %v1119 = vadd.f32 %v1117, %v1118
          %v1120 = vsel %vm741, %v1065, 0.0
          %v1121 = vadd.f32 %v1119, %v1120
          %v1122 = vsel %vm741, %v1066, 0.0
          %v1123 = vadd.f32 %v1121, %v1122
          %v1124 = vsel %vm741, %v1067, 0.0
          %v1125 = vadd.f32 %v1123, %v1124
          %v1126 = vsel %vm741, %v1068, 0.0
          %v1127 = vadd.f32 %v1125, %v1126
          %v1128 = vsel %vm741, %v1069, 0.0
          %v1129 = vadd.f32 %v1127, %v1128
          %v1130 = vsel %vm741, %v1070, 0.0
          %v1131 = vadd.f32 %v1129, %v1130
          %v1132 = vsel %vm741, %v1071, 0.0
          %v1133 = vadd.f32 %v1131, %v1132
          %v1134 = vsel %vm741, %v1072, 0.0
          %v1135 = vadd.f32 %v1133, %v1134
          %v1136 = vrot.slane %v1135, 4
          %v1137 = vadd.f32 %v1135, %v1136
          %v1138 = vrot.slane %v1137, 2
          %v1139 = vadd.f32 %v1137, %v1138
          %v1140 = vrot.slane %v1139, 1
          %v1141 = vadd.f32 %v1139, %v1140
          %1142 = vst.msk [vmem:[%s267] sm:$0x1] %vm1039, %v1141
        $region36: #{tpu_custom_call.1} parent=27 // pred_fallthru
          _
        %s1143 = smul.u32 32, %s27
        %p1144 = scmp.lt.s32.totalorder %s1143, 63
        %s1145 = scalar_select %p1144, %s1143, 63
        %p1146 = scmp.lt.s32.totalorder %s28, 0
        %s1147 = scalar_select %p1146, %s28, 0
        %s1148 = sadd.s32 %s1147, %s1145
        %s1149 = smul.addr %s1148, 4
        %s1150 = scalar_lea.vmem %s2, %s1149
        %s1151 = sand.u32 %s135, 1
        %s1152 = scalar_lea.sflag [#allocation4], %s1151
        %s1153 = sand.u32 %s135, 1
        %s1154 = scalar_lea.vmem [#allocation3], %s1153
        %s1155 = sand.u32 %s163, 1
        %s1156 = scalar_lea.sflag [#allocation6], %s1155
        %s1157 = sand.u32 %s163, 1
        %s1158 = scalar_lea.vmem [#allocation5], %s1157
        // Predicated region
        $region37: #{tpu_custom_call.1} parent=27 // pred_check
          %p1159 = pneg %p117
        $region38: #{tpu_custom_call.1} parent=27 // pred_check_branch
          %1161 = sbr.rel (%p1159) target = $region40
        $region39: #{tpu_custom_call.1} parent=27 // pred_region
          %s1162 = smul.u32 32, %s27
        $region40: #{tpu_custom_call.1} parent=27 // pred_fallthru
          _
        // Predicated region
        $region41: #{tpu_custom_call.1} parent=27 // pred_check
          %p1163 = pneg %p145
        $region42: #{tpu_custom_call.1} parent=27 // pred_check_branch
          %1165 = sbr.rel (%p1163) target = $region44
        $region43: #{tpu_custom_call.1} parent=27 // pred_region
          %s1167 = ssub.s32 16, 16
          %1168 = vsyncadd %s1152, %s1167
          %s1169 = sadd.s32 %s28, %s27
          %s1170 = smul.addr %s1169, 16
          %s1171 = scalar_lea.hbm %s3, %s1170
          %s1173 = sshll.u32 %s1154, 4
          %s1174 = int_to_ptr.vmem [resolvable:$true] %s1173
          %1176 = dma.vmem_to_hbm [thread:$0]  %s1174, 16, %s1171, %s1152
        $region44: #{tpu_custom_call.1} parent=27 // pred_fallthru
          _
        // Predicated region
        $region45: #{tpu_custom_call.1} parent=27 // pred_check
          %p1177 = pneg %p173
        $region46: #{tpu_custom_call.1} parent=27 // pred_check_branch
          %1179 = sbr.rel (%p1177) target = $region48
        $region47: #{tpu_custom_call.1} parent=27 // pred_region
          %s1181 = ssub.s32 16, 16
          %1182 = vsyncadd %s1156, %s1181
          %s1183 = sadd.s32 %s28, %s27
          %s1184 = smul.addr %s1183, 16
          %s1185 = scalar_lea.hbm %s4, %s1184
          %s1187 = sshll.u32 %s1158, 4
          %s1188 = int_to_ptr.vmem [resolvable:$true] %s1187
          %1190 = dma.vmem_to_hbm [thread:$0]  %s1188, 16, %s1185, %s1156
        $region48: #{tpu_custom_call.1} parent=27 // pred_fallthru
          _
      $region28: #{tpu_custom_call.1} parent=5 // pred_fallthru
        _
      %p1191 = scmp.le.s32.totalorder 2, %s17
      // Predicated region
      $region49: #{tpu_custom_call.1} parent=5 // pred_check
        %p1192 = pneg %p1191
      $region50: #{tpu_custom_call.1} parent=5 // pred_check_branch
        %1194 = sbr.rel (%p1192) target = $region52
      $region51: #{tpu_custom_call.1} parent=5 // pred_region
        %s1195 = ssub.s32 %s17, 2
        // Predicated region
        $region53: #{tpu_custom_call.1} parent=51 // pred_check
          %p1196 = pneg %p123
        $region54: #{tpu_custom_call.1} parent=51 // pred_check_branch
          %1198 = sbr.rel (%p1196) target = $region56
        $region55: #{tpu_custom_call.1} parent=51 // pred_region
          %s1199 = smul.u32 32, %s30
          %p1200 = scmp.lt.s32.totalorder %s1199, 63
          %s1201 = scalar_select %p1200, %s1199, 63
          %p1202 = scmp.lt.s32.totalorder %s31, 0
          %s1203 = scalar_select %p1202, %s31, 0
          %s1204 = sadd.s32 %s1203, %s1201
          %s1205 = smul.addr %s1204, 4
          %s1206 = scalar_lea.vmem %s2, %s1205
        $region56: #{tpu_custom_call.1} parent=51 // pred_fallthru
          _
        // Predicated region
        $region57: #{tpu_custom_call.1} parent=51 // pred_check
          %p1207 = pneg %p151
        $region58: #{tpu_custom_call.1} parent=51 // pred_check_branch
          %1209 = sbr.rel (%p1207) target = $region60
        $region59: #{tpu_custom_call.1} parent=51 // pred_region
          %s1210 = sand.u32 %s136, 1
          %s1211 = scalar_lea.sflag [#allocation4], %s1210
          %s1212 = sand.u32 %s136, 1
          %s1213 = scalar_lea.vmem [#allocation3], %s1212
          %1214 = dma.done %s1211, 16
        $region60: #{tpu_custom_call.1} parent=51 // pred_fallthru
          _
        // Predicated region
        $region61: #{tpu_custom_call.1} parent=51 // pred_check
          %p1215 = pneg %p179
        $region62: #{tpu_custom_call.1} parent=51 // pred_check_branch
          %1217 = sbr.rel (%p1215) target = $region64
        $region63: #{tpu_custom_call.1} parent=51 // pred_region
          %s1218 = sand.u32 %s164, 1
          %s1219 = scalar_lea.sflag [#allocation6], %s1218
          %s1220 = sand.u32 %s164, 1
          %s1221 = scalar_lea.vmem [#allocation5], %s1220
          %1222 = dma.done %s1219, 16
        $region64: #{tpu_custom_call.1} parent=51 // pred_fallthru
          _
      $region52: #{tpu_custom_call.1} parent=5 // pred_fallthru
        _
    $region6: #{tpu_custom_call.1} parent=1 // loop_footer
      %s21 = sadd.s32 1, %s17
    $region7: #{tpu_custom_call.1} parent=1 // loop_footer_branch
      %16 = sbr.rel target = $region3
    $region8: #{tpu_custom_call.1} parent=1 // loop_exit
      _
    %1223 = vsyncpa [#allocation4], 1
    %s1224 = scalar_lea.sflag [#allocation4], 1
    %1225 = vsyncpa %s1224, 1
    %1226 = vsyncpa [#allocation6], 1
    %s1227 = scalar_lea.sflag [#allocation6], 1
    %1228 = vsyncpa %s1227, 1

</llo_original>
